<compile_context>
chip_gen: v7x
topology: tpu7x:2x2x1
jax: 0.10.0
libtpu: 0.0.40
codegen_flags: <defaults>
</compile_context>

<pallas_src>
import functools

import jax
import jax.numpy as jnp
from jax.experimental import pallas as pl
from jax.experimental.pallas import tpu as pltpu


def _round_up(v, m):
    return -(-v // m) * m


def _cdiv(a, b):
    return -(-a // b)


def _num_tensorcores():
    """2 TensorCores per chip on v7x, 1 on v5e/v6e (grid is a serial loop there)."""
    try:
        kind = jax.devices()[0].device_kind.lower()
    except Exception:
        return 1
    return 2 if "7" in kind else 1


def _pick_blk_px(l_total, n_batch, max_px=1024):
    """Pixel-tile size: multiple of 128, as large as reasonable (>=256 preferred
    for the 256-wide v6e/v7x MXU), shrunk only if needed to give every
    TensorCore at least one grid step."""
    blk = min(max_px, _round_up(l_total, 128))
    min_steps = _num_tensorcores()
    while n_batch * _cdiv(l_total, blk) < min_steps and blk > 128:
        blk -= 128
    return blk


def _vmem_limit_bytes(cin, cout, win, blk, kh, kw):
    """Per-step VMEM budget (padded layouts, double buffers), clamped to the
    chip's actual VMEM capacity."""
    def rnd(v, m):
        return -(-v // m) * m
    x_blk = rnd(cin, 16) * rnd(win, 128) * 2        # bf16 halo window
    o_blk = rnd(cout, 8) * rnd(blk, 128) * 4        # f32 output tile
    w_all = kh * kw * rnd(cout, 16) * rnd(cin, 128) * 2
    acc = rnd(cout, 8) * rnd(blk, 128) * 4
    est = 2 * (x_blk + o_blk) + w_all + acc + (2 << 20)
    try:
        cap = pltpu.get_tpu_info().vmem_capacity_bytes
    except Exception:
        cap = 64 * 2**20                            # conservative (v7x) fallback
    return int(min(max(2 * est, 16 * 2**20), (2 * cap) // 3))


def _conv_bn_relu_kernel(x_ref, w_ref, bias_ref, o_ref, *, kh, kw, wp):
    """One (batch, pixel-tile) step: relu(conv(x) with BN folded in).

    x_ref:    (Cin, win)         bf16  overlapping flat window (tile + halo)
    w_ref:    (KH*KW, Cout, Cin) bf16  BN-scale-folded weights, one LHS per tap
    bias_ref: (Cout, 1)          f32   folded BN bias
    o_ref:    (Cout, blk)        f32   lane-dense output tile (flat pixels)
    """
    blk = o_ref.shape[-1]
    cout = o_ref.shape[0]

    acc = jnp.zeros((cout, blk), jnp.float32)
    for i in range(kh):
        for j in range(kw):
            # Static lane slice: contiguous flat-pixel window for tap (i, j).
            win = x_ref[:, pl.ds(i * wp + j, blk)]            # (Cin, blk)
            acc = acc + jnp.dot(w_ref[i * kw + j], win,
                                preferred_element_type=jnp.float32)

    o_ref[...] = jnp.maximum(acc + bias_ref[...], 0.0).astype(o_ref.dtype)


@functools.partial(jax.jit, static_argnames=("stride", "padding", "eps"))
def basic_conv2d(x_nchw, weight, gamma, beta, running_mean, running_var,
                 *, stride, padding, eps=1e-3):
    """Forward of BasicConv2d. x_nchw: (N, Cin, H, W) f32; weight: (Cout, Cin, KH, KW)."""
    n, cin, h, w = x_nchw.shape
    cout, _, kh, kw = weight.shape
    hp, wp = h + 2 * padding, w + 2 * padding

    # Stride-1 "wide" output grid: WP columns per row; the last KW-1 columns of
    # each row are wrap-around garbage and are sliced off afterwards.
    oh1, ow1 = hp - kh + 1, wp - kw + 1
    l_flat = oh1 * wp

    blk = _pick_blk_px(l_flat, n)
    n_tiles = _cdiv(l_flat, blk)
    l_pad = n_tiles * blk
    halo = (kh - 1) * wp + (kw - 1)
    win = _round_up(blk + halo, 128)
    xlen = (n_tiles - 1) * blk + win

    # Glue (single fused XLA copy): zero-pad spatially (channels-first, no
    # transpose), flatten spatial, cast to bf16, lay out overlapping halo
    # windows so every kernel slice offset is static and O(tile)-sized.
    x_pad = jnp.pad(x_nchw, ((0, 0), (0, 0),
                             (padding, padding), (padding, padding)))
    x_flat = x_pad.reshape(n, cin, hp * wp).astype(jnp.bfloat16)
    x_flat = jnp.pad(x_flat, ((0, 0), (0, 0), (0, xlen - hp * wp)))
    x_win = jnp.stack(
        [x_flat[:, :, t * blk: t * blk + win] for t in range(n_tiles)], axis=1
    )                                                     # (N, T, Cin, win)

    # Fold BatchNorm (eval mode, running stats) into per-Cout scale and bias.
    scale = gamma / jnp.sqrt(running_var + eps)                       # (Cout,)
    bias = (beta - running_mean * scale).reshape(cout, 1).astype(jnp.float32)
    # bf16 weights to match the bf16 activations on the MXU (weight tensor is
    # tiny; the precision loss is dominated by the bf16 activation cast).
    w_taps = (jnp.transpose(weight * scale[:, None, None, None], (2, 3, 0, 1))
              .reshape(kh * kw, cout, cin).astype(jnp.bfloat16))

    kernel = functools.partial(_conv_bn_relu_kernel, kh=kh, kw=kw, wp=wp)

    out = pl.pallas_call(
        kernel,
        out_shape=jax.ShapeDtypeStruct((n, cout, l_pad), jnp.float32),
        grid_spec=pltpu.PrefetchScalarGridSpec(
            num_scalar_prefetch=0,
            grid=(n, n_tiles),
            in_specs=[
                # Per-step halo window (tile + halo), not the whole image.
                pl.BlockSpec((None, None, cin, win), lambda b, t: (b, t, 0, 0)),
                pl.BlockSpec((kh * kw, cout, cin), lambda b, t: (0, 0, 0)),
                pl.BlockSpec((cout, 1), lambda b, t: (0, 0)),
            ],
            out_specs=pl.BlockSpec((None, cout, blk), lambda b, t: (b, 0, t)),
        ),
        compiler_params=pltpu.CompilerParams(
            dimension_semantics=("parallel", "parallel"),
            vmem_limit_bytes=_vmem_limit_bytes(cin, cout, win, blk, kh, kw),
        ),
    )(x_win, w_taps, bias)

    # Drop padded tail + wrap columns; reshape to NCHW; subsample for stride>1.
    out = out[:, :, :l_flat].reshape(n, cout, oh1, wp)[:, :, :, :ow1]
    if stride > 1:
        out = out[:, :, ::stride, ::stride]
    return out


if __name__ == "__main__":
    # BasicConv2d(in_planes=4, out_planes=8, kernel_size=3, stride=1, padding=1)
    N, CIN, H, W = 2, 4, 16, 16
    COUT, KH, KW = 8, 3, 3
    STRIDE, PADDING = 1, 1

    key = jax.random.PRNGKey(0)
    k_x, k_w, k_g, k_b, k_m, k_v = jax.random.split(key, 6)

    x = jax.random.normal(k_x, (N, CIN, H, W), dtype=jnp.float32)
    weight = jax.random.normal(k_w, (COUT, CIN, KH, KW), dtype=jnp.float32) * 0.1
    gamma = 1.0 + 0.1 * jax.random.normal(k_g, (COUT,), dtype=jnp.float32)
    beta = 0.1 * jax.random.normal(k_b, (COUT,), dtype=jnp.float32)
    running_mean = 0.1 * jax.random.normal(k_m, (COUT,), dtype=jnp.float32)
    running_var = jnp.abs(jax.random.normal(k_v, (COUT,), dtype=jnp.float32)) + 0.5

    y = basic_conv2d(x, weight, gamma, beta, running_mean, running_var,
                     stride=STRIDE, padding=PADDING)
    y = jax.block_until_ready(y)

    # Pure-JAX f32 reference (conv + folded BN + ReLU).
    ref_conv = jax.lax.conv_general_dilated(
        x, weight, window_strides=(STRIDE, STRIDE),
        padding=[(PADDING, PADDING), (PADDING, PADDING)],
        dimension_numbers=("NCHW", "OIHW", "NCHW"))
    scale = gamma / jnp.sqrt(running_var + 1e-3)
    bias = beta - running_mean * scale
    ref = jnp.maximum(ref_conv * scale[None, :, None, None]
                      + bias[None, :, None, None], 0.0)

    assert y.shape == (N, COUT, H, W), y.shape
    max_err = float(jnp.max(jnp.abs(y - ref)))
    # bf16 matmul inputs with f32 accumulation: tolerance loosened vs f32 ref.
    assert max_err < 5e-2, max_err

    print("KERNEL_OK")
</pallas_src>

<mosaic_0001>
module attributes {stable_mosaic.version = 11 : i64} {
  func.func @_conv_bn_relu_kernel(%arg0: i32, %arg1: i32, %arg2: memref<1x1x4x512xbf16, #tpu.memory_space<vmem>>, %arg3: memref<9x8x4xbf16, #tpu.memory_space<vmem>>, %arg4: memref<8x1xf32, #tpu.memory_space<vmem>>, %arg5: memref<1x8x384xf32, #tpu.memory_space<vmem>>) attributes {dimension_semantics = [#tpu.dimension_semantics<parallel>, #tpu.dimension_semantics<parallel>], iteration_bounds = array<i64: 2, 1>, scalar_prefetch = 0 : i64, scratch_operands = 0 : i64, tpu.core_type = #tpu.core_type<tc>, window_params = [{transform_indices = @transform_0, window_bounds = array<i64: 1, 1, 4, 512>}, {pipeline_mode = #tpu.pipeline_mode<synchronous>, transform_indices = @transform_1, window_bounds = array<i64: 9, 8, 4>}, {pipeline_mode = #tpu.pipeline_mode<synchronous>, transform_indices = @transform_2, window_bounds = array<i64: 8, 1>}, {transform_indices = @transform_3, window_bounds = array<i64: 1, 8, 384>}]} {
    %cst = arith.constant 0.000000e+00 : f32
    %0 = vector.broadcast %cst : f32 to vector<8x384xf32>
    %c0 = arith.constant 0 : index
    %c0_0 = arith.constant 0 : index
    %c0_1 = arith.constant 0 : index
    %c0_2 = arith.constant 0 : index
    %1 = vector.load %arg2[%c0, %c0_0, %c0_1, %c0_2] : memref<1x1x4x512xbf16, #tpu.memory_space<vmem>>, vector<1x1x4x384xbf16>
    %2 = vector.shape_cast %1 : vector<1x1x4x384xbf16> to vector<4x384xbf16>
    %c0_3 = arith.constant 0 : index
    %c0_4 = arith.constant 0 : index
    %c0_5 = arith.constant 0 : index
    %3 = vector.load %arg3[%c0_3, %c0_4, %c0_5] : memref<9x8x4xbf16, #tpu.memory_space<vmem>>, vector<1x8x4xbf16>
    %4 = vector.shape_cast %3 : vector<1x8x4xbf16> to vector<8x4xbf16>
    %cst_6 = arith.constant dense<0.000000e+00> : vector<8x384xf32>
    %5 = tpu.matmul %4, %2, %cst_6 {dimension_numbers = #tpu.dot_dimension_numbers<[1], [0], [0], [1], [0, 0, 1, 1], [], []>} : vector<8x4xbf16>, vector<4x384xbf16>, vector<8x384xf32> -> vector<8x384xf32>
    %6 = arith.addf %0, %5 : vector<8x384xf32>
    %c0_7 = arith.constant 0 : index
    %c0_8 = arith.constant 0 : index
    %c0_9 = arith.constant 0 : index
    %c1 = arith.constant 1 : index
    %7 = vector.load %arg2[%c0_7, %c0_8, %c0_9, %c1] : memref<1x1x4x512xbf16, #tpu.memory_space<vmem>>, vector<1x1x4x384xbf16>
    %8 = vector.shape_cast %7 : vector<1x1x4x384xbf16> to vector<4x384xbf16>
    %c1_10 = arith.constant 1 : index
    %c0_11 = arith.constant 0 : index
    %c0_12 = arith.constant 0 : index
    %9 = vector.load %arg3[%c1_10, %c0_11, %c0_12] : memref<9x8x4xbf16, #tpu.memory_space<vmem>>, vector<1x8x4xbf16>
    %10 = vector.shape_cast %9 : vector<1x8x4xbf16> to vector<8x4xbf16>
    %cst_13 = arith.constant dense<0.000000e+00> : vector<8x384xf32>
    %11 = tpu.matmul %10, %8, %cst_13 {dimension_numbers = #tpu.dot_dimension_numbers<[1], [0], [0], [1], [0, 0, 1, 1], [], []>} : vector<8x4xbf16>, vector<4x384xbf16>, vector<8x384xf32> -> vector<8x384xf32>
    %12 = arith.addf %6, %11 : vector<8x384xf32>
    %c0_14 = arith.constant 0 : index
    %c0_15 = arith.constant 0 : index
    %c0_16 = arith.constant 0 : index
    %c2 = arith.constant 2 : index
    %13 = vector.load %arg2[%c0_14, %c0_15, %c0_16, %c2] : memref<1x1x4x512xbf16, #tpu.memory_space<vmem>>, vector<1x1x4x384xbf16>
    %14 = vector.shape_cast %13 : vector<1x1x4x384xbf16> to vector<4x384xbf16>
    %c2_17 = arith.constant 2 : index
    %c0_18 = arith.constant 0 : index
    %c0_19 = arith.constant 0 : index
    %15 = vector.load %arg3[%c2_17, %c0_18, %c0_19] : memref<9x8x4xbf16, #tpu.memory_space<vmem>>, vector<1x8x4xbf16>
    %16 = vector.shape_cast %15 : vector<1x8x4xbf16> to vector<8x4xbf16>
    %cst_20 = arith.constant dense<0.000000e+00> : vector<8x384xf32>
    %17 = tpu.matmul %16, %14, %cst_20 {dimension_numbers = #tpu.dot_dimension_numbers<[1], [0], [0], [1], [0, 0, 1, 1], [], []>} : vector<8x4xbf16>, vector<4x384xbf16>, vector<8x384xf32> -> vector<8x384xf32>
    %18 = arith.addf %12, %17 : vector<8x384xf32>
    %c0_21 = arith.constant 0 : index
    %c0_22 = arith.constant 0 : index
    %c0_23 = arith.constant 0 : index
    %c18 = arith.constant 18 : index
    %19 = vector.load %arg2[%c0_21, %c0_22, %c0_23, %c18] : memref<1x1x4x512xbf16, #tpu.memory_space<vmem>>, vector<1x1x4x384xbf16>
    %20 = vector.shape_cast %19 : vector<1x1x4x384xbf16> to vector<4x384xbf16>
    %c3 = arith.constant 3 : index
    %c0_24 = arith.constant 0 : index
    %c0_25 = arith.constant 0 : index
    %21 = vector.load %arg3[%c3, %c0_24, %c0_25] : memref<9x8x4xbf16, #tpu.memory_space<vmem>>, vector<1x8x4xbf16>
    %22 = vector.shape_cast %21 : vector<1x8x4xbf16> to vector<8x4xbf16>
    %cst_26 = arith.constant dense<0.000000e+00> : vector<8x384xf32>
    %23 = tpu.matmul %22, %20, %cst_26 {dimension_numbers = #tpu.dot_dimension_numbers<[1], [0], [0], [1], [0, 0, 1, 1], [], []>} : vector<8x4xbf16>, vector<4x384xbf16>, vector<8x384xf32> -> vector<8x384xf32>
    %24 = arith.addf %18, %23 : vector<8x384xf32>
    %c0_27 = arith.constant 0 : index
    %c0_28 = arith.constant 0 : index
    %c0_29 = arith.constant 0 : index
    %c19 = arith.constant 19 : index
    %25 = vector.load %arg2[%c0_27, %c0_28, %c0_29, %c19] : memref<1x1x4x512xbf16, #tpu.memory_space<vmem>>, vector<1x1x4x384xbf16>
    %26 = vector.shape_cast %25 : vector<1x1x4x384xbf16> to vector<4x384xbf16>
    %c4 = arith.constant 4 : index
    %c0_30 = arith.constant 0 : index
    %c0_31 = arith.constant 0 : index
    %27 = vector.load %arg3[%c4, %c0_30, %c0_31] : memref<9x8x4xbf16, #tpu.memory_space<vmem>>, vector<1x8x4xbf16>
    %28 = vector.shape_cast %27 : vector<1x8x4xbf16> to vector<8x4xbf16>
    %cst_32 = arith.constant dense<0.000000e+00> : vector<8x384xf32>
    %29 = tpu.matmul %28, %26, %cst_32 {dimension_numbers = #tpu.dot_dimension_numbers<[1], [0], [0], [1], [0, 0, 1, 1], [], []>} : vector<8x4xbf16>, vector<4x384xbf16>, vector<8x384xf32> -> vector<8x384xf32>
    %30 = arith.addf %24, %29 : vector<8x384xf32>
    %c0_33 = arith.constant 0 : index
    %c0_34 = arith.constant 0 : index
    %c0_35 = arith.constant 0 : index
    %c20 = arith.constant 20 : index
    %31 = vector.load %arg2[%c0_33, %c0_34, %c0_35, %c20] : memref<1x1x4x512xbf16, #tpu.memory_space<vmem>>, vector<1x1x4x384xbf16>
    %32 = vector.shape_cast %31 : vector<1x1x4x384xbf16> to vector<4x384xbf16>
    %c5 = arith.constant 5 : index
    %c0_36 = arith.constant 0 : index
    %c0_37 = arith.constant 0 : index
    %33 = vector.load %arg3[%c5, %c0_36, %c0_37] : memref<9x8x4xbf16, #tpu.memory_space<vmem>>, vector<1x8x4xbf16>
    %34 = vector.shape_cast %33 : vector<1x8x4xbf16> to vector<8x4xbf16>
    %cst_38 = arith.constant dense<0.000000e+00> : vector<8x384xf32>
    %35 = tpu.matmul %34, %32, %cst_38 {dimension_numbers = #tpu.dot_dimension_numbers<[1], [0], [0], [1], [0, 0, 1, 1], [], []>} : vector<8x4xbf16>, vector<4x384xbf16>, vector<8x384xf32> -> vector<8x384xf32>
    %36 = arith.addf %30, %35 : vector<8x384xf32>
    %c0_39 = arith.constant 0 : index
    %c0_40 = arith.constant 0 : index
    %c0_41 = arith.constant 0 : index
    %c36 = arith.constant 36 : index
    %37 = vector.load %arg2[%c0_39, %c0_40, %c0_41, %c36] : memref<1x1x4x512xbf16, #tpu.memory_space<vmem>>, vector<1x1x4x384xbf16>
    %38 = vector.shape_cast %37 : vector<1x1x4x384xbf16> to vector<4x384xbf16>
    %c6 = arith.constant 6 : index
    %c0_42 = arith.constant 0 : index
    %c0_43 = arith.constant 0 : index
    %39 = vector.load %arg3[%c6, %c0_42, %c0_43] : memref<9x8x4xbf16, #tpu.memory_space<vmem>>, vector<1x8x4xbf16>
    %40 = vector.shape_cast %39 : vector<1x8x4xbf16> to vector<8x4xbf16>
    %cst_44 = arith.constant dense<0.000000e+00> : vector<8x384xf32>
    %41 = tpu.matmul %40, %38, %cst_44 {dimension_numbers = #tpu.dot_dimension_numbers<[1], [0], [0], [1], [0, 0, 1, 1], [], []>} : vector<8x4xbf16>, vector<4x384xbf16>, vector<8x384xf32> -> vector<8x384xf32>
    %42 = arith.addf %36, %41 : vector<8x384xf32>
    %c0_45 = arith.constant 0 : index
    %c0_46 = arith.constant 0 : index
    %c0_47 = arith.constant 0 : index
    %c37 = arith.constant 37 : index
    %43 = vector.load %arg2[%c0_45, %c0_46, %c0_47, %c37] : memref<1x1x4x512xbf16, #tpu.memory_space<vmem>>, vector<1x1x4x384xbf16>
    %44 = vector.shape_cast %43 : vector<1x1x4x384xbf16> to vector<4x384xbf16>
    %c7 = arith.constant 7 : index
    %c0_48 = arith.constant 0 : index
    %c0_49 = arith.constant 0 : index
    %45 = vector.load %arg3[%c7, %c0_48, %c0_49] : memref<9x8x4xbf16, #tpu.memory_space<vmem>>, vector<1x8x4xbf16>
    %46 = vector.shape_cast %45 : vector<1x8x4xbf16> to vector<8x4xbf16>
    %cst_50 = arith.constant dense<0.000000e+00> : vector<8x384xf32>
    %47 = tpu.matmul %46, %44, %cst_50 {dimension_numbers = #tpu.dot_dimension_numbers<[1], [0], [0], [1], [0, 0, 1, 1], [], []>} : vector<8x4xbf16>, vector<4x384xbf16>, vector<8x384xf32> -> vector<8x384xf32>
    %48 = arith.addf %42, %47 : vector<8x384xf32>
    %c0_51 = arith.constant 0 : index
    %c0_52 = arith.constant 0 : index
    %c0_53 = arith.constant 0 : index
    %c38 = arith.constant 38 : index
    %49 = vector.load %arg2[%c0_51, %c0_52, %c0_53, %c38] : memref<1x1x4x512xbf16, #tpu.memory_space<vmem>>, vector<1x1x4x384xbf16>
    %50 = vector.shape_cast %49 : vector<1x1x4x384xbf16> to vector<4x384xbf16>
    %c8 = arith.constant 8 : index
    %c0_54 = arith.constant 0 : index
    %c0_55 = arith.constant 0 : index
    %51 = vector.load %arg3[%c8, %c0_54, %c0_55] : memref<9x8x4xbf16, #tpu.memory_space<vmem>>, vector<1x8x4xbf16>
    %52 = vector.shape_cast %51 : vector<1x8x4xbf16> to vector<8x4xbf16>
    %cst_56 = arith.constant dense<0.000000e+00> : vector<8x384xf32>
    %53 = tpu.matmul %52, %50, %cst_56 {dimension_numbers = #tpu.dot_dimension_numbers<[1], [0], [0], [1], [0, 0, 1, 1], [], []>} : vector<8x4xbf16>, vector<4x384xbf16>, vector<8x384xf32> -> vector<8x384xf32>
    %54 = arith.addf %48, %53 : vector<8x384xf32>
    %c0_57 = arith.constant 0 : index
    %c0_58 = arith.constant 0 : index
    %55 = vector.load %arg4[%c0_57, %c0_58] : memref<8x1xf32, #tpu.memory_space<vmem>>, vector<8x1xf32>
    %56 = vector.broadcast %55 : vector<8x1xf32> to vector<8x384xf32>
    %57 = arith.addf %54, %56 : vector<8x384xf32>
    %cst_59 = arith.constant 0.000000e+00 : f32
    %58 = vector.broadcast %cst_59 : f32 to vector<8x384xf32>
    %59 = arith.maximumf %57, %58 : vector<8x384xf32>
    %c0_60 = arith.constant 0 : index
    %c0_61 = arith.constant 0 : index
    %c0_62 = arith.constant 0 : index
    %60 = vector.load %arg5[%c0_60, %c0_61, %c0_62] : memref<1x8x384xf32, #tpu.memory_space<vmem>>, vector<1x8x384xf32>
    %61 = vector.shape_cast %60 : vector<1x8x384xf32> to vector<8x384xf32>
    %62 = vector.shape_cast %59 : vector<8x384xf32> to vector<1x8x384xf32>
    tpu.vector_store %arg5[%c0_60, %c0_61, %c0_62], %62 {strides = array<i32>} : memref<1x8x384xf32, #tpu.memory_space<vmem>>, vector<1x8x384xf32>,
    return
  }
  func.func @transform_0(%arg0: i32, %arg1: i32) -> (i32, i32, i32, i32) {
    %c0_i32 = arith.constant 0 : i32
    %c0_i32_0 = arith.constant 0 : i32
    %c0_i32_1 = arith.constant 0 : i32
    return %arg0, %arg1, %c0_i32, %c0_i32_0 : i32, i32, i32, i32
  }
  func.func @transform_1(%arg0: i32, %arg1: i32) -> (i32, i32, i32) {
    %c0_i32 = arith.constant 0 : i32
    %c0_i32_0 = arith.constant 0 : i32
    %c0_i32_1 = arith.constant 0 : i32
    %c0_i32_2 = arith.constant 0 : i32
    return %c0_i32, %c0_i32_0, %c0_i32_1 : i32, i32, i32
  }
  func.func @transform_2(%arg0: i32, %arg1: i32) -> (i32, i32) {
    %c0_i32 = arith.constant 0 : i32
    %c0_i32_0 = arith.constant 0 : i32
    %c0_i32_1 = arith.constant 0 : i32
    return %c0_i32, %c0_i32_0 : i32, i32
  }
  func.func @transform_3(%arg0: i32, %arg1: i32) -> (i32, i32, i32) {
    %c0_i32 = arith.constant 0 : i32
    %c0_i32_0 = arith.constant 0 : i32
    return %arg0, %c0_i32, %arg1 : i32, i32, i32
  }
}

</mosaic_0001>

<llo_original>
// kernel: basic_conv2d.1
$region0: #{basic_conv2d.1}
  #allocation0 [shape = 'u32[]', space=smem, size = 0x4, offset = 0x4, fixed_abs, tag = 'smem constant byte address 0x4 - core index']
  #allocation1 [shape = 'u32[144,128]{1,0:T(1,128)}', space=vmem, size = 0x12000, scoped, tag = 'internal scratch']
  %s0 = inlined_call_operand.vmem [shape: bf16[2,1,4,512], index: 0, kind: input, shape index: {}]
  %s1 = inlined_call_operand.vmem [shape: bf16[9,8,4], index: 1, kind: input, shape index: {}]
  %s2 = inlined_call_operand.vmem [shape: f32[8,1], index: 2, kind: input, shape index: {}]
  %s3 = inlined_call_operand.vmem [shape: f32[2,8,384], index: 3, kind: output, shape index: {}]
  %s4 = sld [smem:[#allocation0]]
  $region45: #{basic_conv2d.1} parent=0
    _
  %s6 = ssub.s32 1, %s4
  %s7 = scalar_select 0, %s6, %s4
  loop: start=0, step=1, limit=4
  $region2: #{basic_conv2d.1} parent=0 // loop_pre_header
    _
  $region3: #{basic_conv2d.1} parent=0 // loop_header
    %s9 = sphi 0, %s13
    %p10 = scmp.ge.s32.totalorder %s9, 4
    %s16 = sphi 0, %s28
    %s17 = sphi 0, %s24
    %s18 = sphi 0, %s16
    %s19 = sphi 0, %s17
    %s20 = sphi 0, %s18
    %s21 = sphi 0, %s19
    %s33 = sphi 0, %s35
    %s36 = sphi 0, %s33
    %s37 = sphi 0, %s36
    %s53 = sphi 0, %s37
    %s57 = sphi 0, %s57
    %s59 = sphi 0, %s57
    %s60 = sphi 0, %s59
    %s74 = sphi 0, %s60
    %s78 = sphi 0, %s78
    %s80 = sphi 0, %s78
    %s81 = sphi 0, %s80
    %s95 = sphi 0, %s81
    %s103 = sphi 0, %s105
    %s106 = sphi 0, %s103
    %s107 = sphi 0, %s106
    %s123 = sphi 0, %s107
  $region4: #{basic_conv2d.1} parent=0 // loop_header_branch
    %12 = sbr.rel (%p10) target = $region8
  $region5: #{basic_conv2d.1} parent=0 // loop_body
    %s14 = ssub.s32 %s9, 1
    %s15 = ssub.s32 %s9, 2
    %s22 = sadd.s32 1, %s17
    %p23 = scmp.ge.s32.totalorder %s22, 1
    %s24 = scalar_select %p23, 0, %s22
    %s25 = sadd.s32 1, %s16
    %s26 = scalar_select %p23, %s25, %s16
    %p27 = scmp.ge.s32.totalorder %s26, 2
    %s28 = scalar_select %p27, 0, %s26
    %s29 = ssub.s32 %s16, %s28
    %s30 = ssub.s32 %s17, %s24
    %s31 = sor.u32 %s29, %s30
    %p32 = scmp.eq.s32.totalorder %s31, 0
    %s34 = sadd.s32 %s33, 1
    %s35 = scalar_select %p32, %s33, %s34
    %p38 = pneg %p32
    %p39 = scmp.eq.s32.totalorder %s9, 1
    %p40 = por %p38, %p39
    %p41 = scmp.ne.s32.totalorder %s33, %s36
    %p42 = scmp.eq.s32.totalorder %s9, 0
    %p43 = por %p41, %p42
    %p44 = scmp.ne.s32.totalorder %s33, %s36
    %p45 = scmp.eq.s32.totalorder %s14, 1
    %p46 = por %p44, %p45
    %p47 = scmp.ne.s32.totalorder %s36, %s37
    %p48 = scmp.eq.s32.totalorder %s14, 0
    %p49 = por %p47, %p48
    %p50 = scmp.ne.s32.totalorder %s36, %s37
    %p51 = scmp.eq.s32.totalorder %s15, 1
    %p52 = por %p50, %p51
    %p54 = scmp.ne.s32.totalorder %s37, %s53
    %p55 = scmp.eq.s32.totalorder %s15, 0
    %p56 = por %p54, %p55
    %s58 = sadd.s32 %s57, 1
    %p61 = scmp.eq.s32.totalorder %s9, 1
    %p62 = scmp.ne.s32.totalorder %s57, %s59
    %p63 = scmp.eq.s32.totalorder %s9, 0
    %p64 = por %p62, %p63
    %p65 = scmp.ne.s32.totalorder %s57, %s59
    %p66 = scmp.eq.s32.totalorder %s14, 1
    %p67 = por %p65, %p66
    %p68 = scmp.ne.s32.totalorder %s59, %s60
    %p69 = scmp.eq.s32.totalorder %s14, 0
    %p70 = por %p68, %p69
    %p71 = scmp.ne.s32.totalorder %s59, %s60
    %p72 = scmp.eq.s32.totalorder %s15, 1
    %p73 = por %p71, %p72
    %p75 = scmp.ne.s32.totalorder %s60, %s74
    %p76 = scmp.eq.s32.totalorder %s15, 0
    %p77 = por %p75, %p76
    %s79 = sadd.s32 %s78, 1
    %p82 = scmp.eq.s32.totalorder %s9, 1
    %p83 = scmp.ne.s32.totalorder %s78, %s80
    %p84 = scmp.eq.s32.totalorder %s9, 0
    %p85 = por %p83, %p84
    %p86 = scmp.ne.s32.totalorder %s78, %s80
    %p87 = scmp.eq.s32.totalorder %s14, 1
    %p88 = por %p86, %p87
    %p89 = scmp.ne.s32.totalorder %s80, %s81
    %p90 = scmp.eq.s32.totalorder %s14, 0
    %p91 = por %p89, %p90
    %p92 = scmp.ne.s32.totalorder %s80, %s81
    %p93 = scmp.eq.s32.totalorder %s15, 1
    %p94 = por %p92, %p93
    %p96 = scmp.ne.s32.totalorder %s81, %s95
    %p97 = scmp.eq.s32.totalorder %s15, 0
    %p98 = por %p96, %p97
    %s99 = ssub.s32 %s16, %s28
    %s100 = ssub.s32 %s17, %s24
    %s101 = sor.u32 %s99, %s100
    %p102 = scmp.eq.s32.totalorder %s101, 0
    %s104 = sadd.s32 %s103, 1
    %s105 = scalar_select %p102, %s103, %s104
    %p108 = pneg %p102
    %p109 = scmp.eq.s32.totalorder %s9, 1
    %p110 = por %p108, %p109
    %p111 = scmp.ne.s32.totalorder %s103, %s106
    %p112 = scmp.eq.s32.totalorder %s9, 0
    %p113 = por %p111, %p112
    %p114 = scmp.ne.s32.totalorder %s103, %s106
    %p115 = scmp.eq.s32.totalorder %s14, 1
    %p116 = por %p114, %p115
    %p117 = scmp.ne.s32.totalorder %s106, %s107
    %p118 = scmp.eq.s32.totalorder %s14, 0
    %p119 = por %p117, %p118
    %p120 = scmp.ne.s32.totalorder %s106, %s107
    %p121 = scmp.eq.s32.totalorder %s15, 1
    %p122 = por %p120, %p121
    %p124 = scmp.ne.s32.totalorder %s107, %s123
    %p125 = scmp.eq.s32.totalorder %s15, 0
    %p126 = por %p124, %p125
    %p127 = scmp.le.s32.totalorder 1, %s9
    %p128 = scmp.lt.s32.totalorder %s9, 3
    %p129 = pnand %p127, %p128
    %p130 = pneg %p129
    // Predicated region
    $region9: #{basic_conv2d.1} parent=5 // pred_check
      _
    $region10: #{basic_conv2d.1} parent=5 // pred_check_branch
      %132 = sbr.rel (%p129) target = $region12
    $region11: #{basic_conv2d.1} parent=5 // pred_region
      %s133 = ssub.s32 %s9, 1
      // Predicated region
      $region13: #{basic_conv2d.1} parent=11 // pred_check
        %p134 = pneg %p70
      $region14: #{basic_conv2d.1} parent=11 // pred_check_branch
        %136 = sbr.rel (%p134) target = $region16
      $region15: #{basic_conv2d.1} parent=11 // pred_region
        _
      $region16: #{basic_conv2d.1} parent=11 // pred_fallthru
        _
      // Predicated region
      $region17: #{basic_conv2d.1} parent=11 // pred_check
        %p137 = pneg %p91
      $region18: #{basic_conv2d.1} parent=11 // pred_check_branch
        %139 = sbr.rel (%p137) target = $region20
      $region19: #{basic_conv2d.1} parent=11 // pred_region
        _
      $region20: #{basic_conv2d.1} parent=11 // pred_fallthru
        _
    $region12: #{basic_conv2d.1} parent=5 // pred_fallthru
      _
    %p140 = scmp.lt.s32.totalorder %s9, 2
    // Predicated region
    $region21: #{basic_conv2d.1} parent=5 // pred_check
      %p141 = pneg %p140
    $region22: #{basic_conv2d.1} parent=5 // pred_check_branch
      %143 = sbr.rel (%p141) target = $region24
    $region23: #{basic_conv2d.1} parent=5 // pred_region
      // Predicated region
      $region25: #{basic_conv2d.1} parent=23 // pred_check
        %p144 = pneg %p43
      $region26: #{basic_conv2d.1} parent=23 // pred_check_branch
        %146 = sbr.rel (%p144) target = $region28
      $region27: #{basic_conv2d.1} parent=23 // pred_region
        %p147 = scmp.lt.s32.totalorder %s16, 1
        %s148 = scalar_select %p147, %s16, 1
        %p149 = scmp.lt.s32.totalorder %s17, 0
        %s150 = scalar_select %p149, %s17, 0
        %s151 = smul.addr %s150, 4
        %s152 = smul.addr %s148, 4
        %s153 = sadd.s32 %s151, %s152
        %s154 = smul.addr %s153, 2
        %s155 = scalar_lea.vmem %s0, %s154
      $region28: #{basic_conv2d.1} parent=23 // pred_fallthru
        _
    $region24: #{basic_conv2d.1} parent=5 // pred_fallthru
      _
    %p156 = scmp.le.s32.totalorder 1, %s9
    %p157 = scmp.lt.s32.totalorder %s9, 3
    %p158 = pnand %p156, %p157
    %p159 = pneg %p158
    // Predicated region
    $region29: #{basic_conv2d.1} parent=5 // pred_check
      _
    $region30: #{basic_conv2d.1} parent=5 // pred_check_branch
      %161 = sbr.rel (%p158) target = $region32
    $region31: #{basic_conv2d.1} parent=5 // pred_region
      %s162 = ssub.s32 %s9, 1
      %p163 = scmp.lt.s32.totalorder %s18, 1
      %s164 = scalar_select %p163, %s18, 1
      %p165 = scmp.lt.s32.totalorder %s19, 0
      %s166 = scalar_select %p165, %s19, 0
      %s167 = smul.addr %s166, 4
      %s168 = smul.addr %s164, 4
      %s169 = sadd.s32 %s167, %s168
      %s170 = smul.addr %s169, 2
      %s171 = scalar_lea.vmem %s0, %s170
      %p172 = pneg %p49
      %p173 = pneg %p46
      %p174 = pneg %p70
      %p175 = pneg %p67
      %p176 = pneg %p91
      %p177 = pneg %p88
      %p178 = pneg %p119
      %p179 = pneg %p116
      %s180 = smul.u32 3, %s19
      %p181 = scmp.lt.s32.totalorder %s18, 1
      %s182 = scalar_select %p181, %s18, 1
      %p183 = scmp.lt.s32.totalorder %s180, 2
      %s184 = scalar_select %p183, %s180, 2
      %s185 = smul.addr %s182, 3
      %s186 = sadd.s32 %s184, %s185
      %s187 = smul.addr %s186, 8
      %s188 = scalar_lea.vmem %s3, %s187
      %p189 = scmp.lt.s32.totalorder %s18, 1
      %s190 = scalar_select %p189, %s18, 1
      %p191 = scmp.lt.s32.totalorder %s19, 0
      %s192 = scalar_select %p191, %s19, 0
      %s193 = smul.addr %s192, 4
      %s194 = smul.addr %s190, 4
      %s195 = sadd.s32 %s193, %s194
      %s196 = smul.addr %s195, 2
      %s197 = scalar_lea.vmem %s0, %s196
      %s198 = smul.u32 3, %s19
      %p199 = scmp.lt.s32.totalorder %s18, 1
      %s200 = scalar_select %p199, %s18, 1
      %p201 = scmp.lt.s32.totalorder %s198, 2
      %s202 = scalar_select %p201, %s198, 2
      %s203 = smul.addr %s200, 3
      %s204 = sadd.s32 %s202, %s203
      %s205 = smul.addr %s204, 8
      %s206 = scalar_lea.vmem %s3, %s205
      %s207 = smul.u32 3, %s19
      %v209 = vld [vmem:[%s197] sm:$0x3f]
      %v210 = vld [vmem:[%s1] sm:$0xf]
      %v211 = vld [vmem:[%s197] sm:$0xff]
      %s212 = scalar_lea.vmem %s1, 4
      %v213 = vld [vmem:[%s212] sm:$0xf]
      %v215 = vcombine.high %v211, %v211
      %v217 = vunpack.c.l.s4 1983009808
      %v218 = vunpack.c.0.s8 %v217
      %v219 = vlaneseq
      %v220 = vshrl.u32 %v219, 7
      %v221 = vsub.s32 %v218, %v220
      %v222 = vrot.slane %v211, %v221
      %v224 = vunpack.c.l.s4 1983009808
      %v225 = vunpack.c.0.s8 %v224
      %v226 = vlaneseq
      %v227 = vshrl.u32 %v226, 7
      %v228 = vsub.s32 %v225, %v227
      %v229 = vrot.slane %v215, %v228
      %v230 = vcombine.high %v222, %v222
      %v231 = vcombine.high %v229, %v229
      %232 = vrot.lane.b32.xlu0 %v222, 127
      %v233 = vpop.permute.xlu0 %232
      %234 = vrot.lane.b32.xlu0 %v230, 127
      %v235 = vpop.permute.xlu0 %234
      %236 = vrot.lane.b32.xlu0 %v229, 127
      %v237 = vpop.permute.xlu0 %236
      %238 = vrot.lane.b32.xlu0 %v231, 127
      %v239 = vpop.permute.xlu0 %238
      %vm240 = vcmask 1039360
      %v241 = vsel %vm240, %v233, %v235
      %v242 = vsel %vm240, %v235, %v237
      %v243 = vsel %vm240, %v237, %v239
      %vm244 = vcmask 31744
      %v246 = vsel %vm244, %v213, 0
      %vm248 = vcmask 1041408
      %v250 = vsel %vm248, %v241, 0
      %v253 = vsel %vm248, %v242, 0
      %v256 = vsel %vm248, %v243, 0
      %258 = vmatprep.subr.bf16.mxu0 %v253
      %259 = vmatpush1.bf16.msra.mxu0 %v250
      %260 = vmatprep.subr.bf16.mxu0 0
      %261 = vmatpush1.bf16.msra.mxu0 0
      %262 = vmatprep.subr.bf16.mxu0 0
      %263 = vmatpush1.bf16.msra.mxu0 0
      %264 = vmatprep.subr.bf16.mxu0 0
      %265 = vmatpush1.bf16.msra.mxu0 0
      %266 = vmatprep.subr.bf16.mxu0 0
      %267 = vmatpush1.bf16.msra.mxu0 0
      %268 = vmatprep.subr.bf16.mxu0 0
      %269 = vmatpush1.bf16.msra.mxu0 0
      %270 = vmatprep.subr.bf16.mxu0 0
      %271 = vmatpush1.bf16.msra.mxu0 0
      %272 = vmatprep.subr.bf16.mxu0 0
      %273 = vmatpush1.bf16.msra.mxu0 0
      %274 = vmatprep.subr.bf16.mxu0 0
      %275 = vmatpush1.bf16.msra.mxu0 0
      %276 = vmatprep.subr.bf16.mxu0 0
      %277 = vmatpush1.bf16.msra.mxu0 0
      %278 = vmatprep.subr.bf16.mxu0 0
      %279 = vmatpush1.bf16.msra.mxu0 0
      %280 = vmatprep.subr.bf16.mxu0 0
      %281 = vmatpush1.bf16.msra.mxu0 0
      %282 = vmatprep.subr.bf16.mxu0 0
      %283 = vmatpush1.bf16.msra.mxu0 0
      %284 = vmatprep.subr.bf16.mxu0 0
      %285 = vmatpush1.bf16.msra.mxu0 0
      %286 = vmatprep.subr.bf16.mxu0 0
      %287 = vmatpush1.bf16.msra.mxu0 0
      %288 = vmatprep.subr.bf16.mxu0 0
      %289 = vmatpush1.bf16.msra.mxu0 0
      %290 = vmatprep.mubr.bf16.mxu0 0
      %291 = vmatmul.mubr.bf16.gmra.mrb[0].mxu0 %v246
      %v292 = vpop.f32.mrb[0].mxu0
      %v293 = vadd.f32 0.0, %v292
      %v294 = vpop.f32.mrb[0].mxu0
      %v295 = vadd.f32 0.0, %v294
      %v296 = vpop.f32.mrb[0].mxu0
      %v297 = vpop.f32.mrb[0].mxu0
      %298 = vdwg.mxu0
      %299 = vmatprep.subr.bf16.mxu0 0
      %300 = vmatpush1.bf16.msra.mxu0 %v256
      %301 = vmatprep.subr.bf16.mxu0 0
      %302 = vmatpush1.bf16.msra.mxu0 0
      %303 = vmatprep.subr.bf16.mxu0 0
      %304 = vmatpush1.bf16.msra.mxu0 0
      %305 = vmatprep.subr.bf16.mxu0 0
      %306 = vmatpush1.bf16.msra.mxu0 0
      %307 = vmatprep.subr.bf16.mxu0 0
      %308 = vmatpush1.bf16.msra.mxu0 0
      %309 = vmatprep.subr.bf16.mxu0 0
      %310 = vmatpush1.bf16.msra.mxu0 0
      %311 = vmatprep.subr.bf16.mxu0 0
      %312 = vmatpush1.bf16.msra.mxu0 0
      %313 = vmatprep.subr.bf16.mxu0 0
      %314 = vmatpush1.bf16.msra.mxu0 0
      %315 = vmatprep.subr.bf16.mxu0 0
      %316 = vmatpush1.bf16.msra.mxu0 0
      %317 = vmatprep.subr.bf16.mxu0 0
      %318 = vmatpush1.bf16.msra.mxu0 0
      %319 = vmatprep.subr.bf16.mxu0 0
      %320 = vmatpush1.bf16.msra.mxu0 0
      %321 = vmatprep.subr.bf16.mxu0 0
      %322 = vmatpush1.bf16.msra.mxu0 0
      %323 = vmatprep.subr.bf16.mxu0 0
      %324 = vmatpush1.bf16.msra.mxu0 0
      %325 = vmatprep.subr.bf16.mxu0 0
      %326 = vmatpush1.bf16.msra.mxu0 0
      %327 = vmatprep.subr.bf16.mxu0 0
      %328 = vmatpush1.bf16.msra.mxu0 0
      %329 = vmatprep.subr.bf16.mxu0 0
      %330 = vmatpush1.bf16.msra.mxu0 0
      %331 = vmatprep.mubr.bf16.mxu0 0
      %332 = vmatmul.mubr.bf16.gmra.mrb[0].mxu0 %v246
      %v333 = vpop.f32.mrb[0].mxu0
      %v334 = vadd.f32 0.0, %v333
      %v335 = vpop.f32.mrb[0].mxu0
      %v336 = vpop.f32.mrb[0].mxu0
      %v337 = vpop.f32.mrb[0].mxu0
      %338 = vdwg.mxu0
      %v340 = vcombine.high %v209, %v209
      %v342 = vunpack.c.l.s4 1983009808
      %v343 = vunpack.c.0.s8 %v342
      %v344 = vlaneseq
      %v345 = vshrl.u32 %v344, 7
      %v346 = vsub.s32 %v343, %v345
      %v347 = vrot.slane %v209, %v346
      %v349 = vunpack.c.l.s4 1983009808
      %v350 = vunpack.c.0.s8 %v349
      %v351 = vlaneseq
      %v352 = vshrl.u32 %v351, 7
      %v353 = vsub.s32 %v350, %v352
      %v354 = vrot.slane %v340, %v353
      %v355 = vcombine.high %v347, %v347
      %v357 = vsel %vm244, %v210, 0
      %v360 = vsel %vm248, %v347, 0
      %v363 = vsel %vm248, %v355, 0
      %v366 = vsel %vm248, %v354, 0
      %368 = vmatprep.subr.bf16.mxu0 %v363
      %369 = vmatpush1.bf16.msra.mxu0 %v360
      %370 = vmatprep.subr.bf16.mxu0 0
      %371 = vmatpush1.bf16.msra.mxu0 0
      %372 = vmatprep.subr.bf16.mxu0 0
      %373 = vmatpush1.bf16.msra.mxu0 0
      %374 = vmatprep.subr.bf16.mxu0 0
      %375 = vmatpush1.bf16.msra.mxu0 0
      %376 = vmatprep.subr.bf16.mxu0 0
      %377 = vmatpush1.bf16.msra.mxu0 0
      %378 = vmatprep.subr.bf16.mxu0 0
      %379 = vmatpush1.bf16.msra.mxu0 0
      %380 = vmatprep.subr.bf16.mxu0 0
      %381 = vmatpush1.bf16.msra.mxu0 0
      %382 = vmatprep.subr.bf16.mxu0 0
      %383 = vmatpush1.bf16.msra.mxu0 0
      %384 = vmatprep.subr.bf16.mxu0 0
      %385 = vmatpush1.bf16.msra.mxu0 0
      %386 = vmatprep.subr.bf16.mxu0 0
      %387 = vmatpush1.bf16.msra.mxu0 0
      %388 = vmatprep.subr.bf16.mxu0 0
      %389 = vmatpush1.bf16.msra.mxu0 0
      %390 = vmatprep.subr.bf16.mxu0 0
      %391 = vmatpush1.bf16.msra.mxu0 0
      %392 = vmatprep.subr.bf16.mxu0 0
      %393 = vmatpush1.bf16.msra.mxu0 0
      %394 = vmatprep.subr.bf16.mxu0 0
      %395 = vmatpush1.bf16.msra.mxu0 0
      %396 = vmatprep.subr.bf16.mxu0 0
      %397 = vmatpush1.bf16.msra.mxu0 0
      %398 = vmatprep.subr.bf16.mxu0 0
      %399 = vmatpush1.bf16.msra.mxu0 0
      %400 = vmatprep.mubr.bf16.mxu0 0
      %401 = vmatmul.mubr.bf16.gmra.mrb[0].mxu0 %v357
      %v402 = vpop.f32.mrb[0].mxu0
      %v403 = vadd.f32 %v293, %v402
      %v404 = vpop.f32.mrb[0].mxu0
      %v405 = vadd.f32 %v295, %v404
      %v406 = vpop.f32.mrb[0].mxu0
      %v407 = vpop.f32.mrb[0].mxu0
      %408 = vdwg.mxu0
      %409 = vmatprep.subr.bf16.mxu0 0
      %410 = vmatpush1.bf16.msra.mxu0 %v366
      %411 = vmatprep.subr.bf16.mxu0 0
      %412 = vmatpush1.bf16.msra.mxu0 0
      %413 = vmatprep.subr.bf16.mxu0 0
      %414 = vmatpush1.bf16.msra.mxu0 0
      %415 = vmatprep.subr.bf16.mxu0 0
      %416 = vmatpush1.bf16.msra.mxu0 0
      %417 = vmatprep.subr.bf16.mxu0 0
      %418 = vmatpush1.bf16.msra.mxu0 0
      %419 = vmatprep.subr.bf16.mxu0 0
      %420 = vmatpush1.bf16.msra.mxu0 0
      %421 = vmatprep.subr.bf16.mxu0 0
      %422 = vmatpush1.bf16.msra.mxu0 0
      %423 = vmatprep.subr.bf16.mxu0 0
      %424 = vmatpush1.bf16.msra.mxu0 0
      %425 = vmatprep.subr.bf16.mxu0 0
      %426 = vmatpush1.bf16.msra.mxu0 0
      %427 = vmatprep.subr.bf16.mxu0 0
      %428 = vmatpush1.bf16.msra.mxu0 0
      %429 = vmatprep.subr.bf16.mxu0 0
      %430 = vmatpush1.bf16.msra.mxu0 0
      %431 = vmatprep.subr.bf16.mxu0 0
      %432 = vmatpush1.bf16.msra.mxu0 0
      %433 = vmatprep.subr.bf16.mxu0 0
      %434 = vmatpush1.bf16.msra.mxu0 0
      %435 = vmatprep.subr.bf16.mxu0 0
      %436 = vmatpush1.bf16.msra.mxu0 0
      %437 = vmatprep.subr.bf16.mxu0 0
      %438 = vmatpush1.bf16.msra.mxu0 0
      %439 = vmatprep.subr.bf16.mxu0 0
      %440 = vmatpush1.bf16.msra.mxu0 0
      %441 = vmatprep.mubr.bf16.mxu0 0
      %442 = vmatmul.mubr.bf16.gmra.mrb[0].mxu0 %v357
      %v443 = vpop.f32.mrb[0].mxu0
      %v444 = vadd.f32 %v334, %v443
      %v445 = vpop.f32.mrb[0].mxu0
      %v446 = vpop.f32.mrb[0].mxu0
      %v447 = vpop.f32.mrb[0].mxu0
      %448 = vdwg.mxu0
      %v449 = vld [vmem:[%s197] sm:$0xff]
      %s450 = scalar_lea.vmem %s1, 8
      %v451 = vld [vmem:[%s450] sm:$0xf]
      %v453 = vcombine.high %v449, %v449
      %v455 = vunpack.c.l.s4 1983009808
      %v456 = vunpack.c.0.s8 %v455
      %v457 = vlaneseq
      %v458 = vshrl.u32 %v457, 7
      %v459 = vsub.s32 %v456, %v458
      %v460 = vrot.slane %v449, %v459
      %v462 = vunpack.c.l.s4 1983009808
      %v463 = vunpack.c.0.s8 %v462
      %v464 = vlaneseq
      %v465 = vshrl.u32 %v464, 7
      %v466 = vsub.s32 %v463, %v465
      %v467 = vrot.slane %v453, %v466
      %v468 = vcombine.high %v460, %v460
      %v469 = vcombine.high %v467, %v467
      %470 = vrot.lane.b32.xlu0 %v460, 126
      %v471 = vpop.permute.xlu0 %470
      %472 = vrot.lane.b32.xlu0 %v468, 126
      %v473 = vpop.permute.xlu0 %472
      %474 = vrot.lane.b32.xlu0 %v467, 126
      %v475 = vpop.permute.xlu0 %474
      %476 = vrot.lane.b32.xlu0 %v469, 126
      %v477 = vpop.permute.xlu0 %476
      %vm478 = vcmask 1031168
      %v479 = vsel %vm478, %v471, %v473
      %v480 = vsel %vm478, %v473, %v475
      %v481 = vsel %vm478, %v475, %v477
      %v483 = vsel %vm244, %v451, 0
      %v486 = vsel %vm248, %v479, 0
      %v489 = vsel %vm248, %v480, 0
      %v492 = vsel %vm248, %v481, 0
      %494 = vmatprep.subr.bf16.mxu0 %v489
      %495 = vmatpush1.bf16.msra.mxu0 %v486
      %496 = vmatprep.subr.bf16.mxu0 0
      %497 = vmatpush1.bf16.msra.mxu0 0
      %498 = vmatprep.subr.bf16.mxu0 0
      %499 = vmatpush1.bf16.msra.mxu0 0
      %500 = vmatprep.subr.bf16.mxu0 0
      %501 = vmatpush1.bf16.msra.mxu0 0
      %502 = vmatprep.subr.bf16.mxu0 0
      %503 = vmatpush1.bf16.msra.mxu0 0
      %504 = vmatprep.subr.bf16.mxu0 0
      %505 = vmatpush1.bf16.msra.mxu0 0
      %506 = vmatprep.subr.bf16.mxu0 0
      %507 = vmatpush1.bf16.msra.mxu0 0
      %508 = vmatprep.subr.bf16.mxu0 0
      %509 = vmatpush1.bf16.msra.mxu0 0
      %510 = vmatprep.subr.bf16.mxu0 0
      %511 = vmatpush1.bf16.msra.mxu0 0
      %512 = vmatprep.subr.bf16.mxu0 0
      %513 = vmatpush1.bf16.msra.mxu0 0
      %514 = vmatprep.subr.bf16.mxu0 0
      %515 = vmatpush1.bf16.msra.mxu0 0
      %516 = vmatprep.subr.bf16.mxu0 0
      %517 = vmatpush1.bf16.msra.mxu0 0
      %518 = vmatprep.subr.bf16.mxu0 0
      %519 = vmatpush1.bf16.msra.mxu0 0
      %520 = vmatprep.subr.bf16.mxu0 0
      %521 = vmatpush1.bf16.msra.mxu0 0
      %522 = vmatprep.subr.bf16.mxu0 0
      %523 = vmatpush1.bf16.msra.mxu0 0
      %524 = vmatprep.subr.bf16.mxu0 0
      %525 = vmatpush1.bf16.msra.mxu0 0
      %526 = vmatprep.mubr.bf16.mxu0 0
      %527 = vmatmul.mubr.bf16.gmra.mrb[0].mxu0 %v483
      %v528 = vpop.f32.mrb[0].mxu0
      %v529 = vadd.f32 0.0, %v528
      %v530 = vpop.f32.mrb[0].mxu0
      %v531 = vadd.f32 0.0, %v530
      %v532 = vpop.f32.mrb[0].mxu0
      %v533 = vpop.f32.mrb[0].mxu0
      %534 = vdwg.mxu0
      %535 = vmatprep.subr.bf16.mxu0 0
      %536 = vmatpush1.bf16.msra.mxu0 %v492
      %537 = vmatprep.subr.bf16.mxu0 0
      %538 = vmatpush1.bf16.msra.mxu0 0
      %539 = vmatprep.subr.bf16.mxu0 0
      %540 = vmatpush1.bf16.msra.mxu0 0
      %541 = vmatprep.subr.bf16.mxu0 0
      %542 = vmatpush1.bf16.msra.mxu0 0
      %543 = vmatprep.subr.bf16.mxu0 0
      %544 = vmatpush1.bf16.msra.mxu0 0
      %545 = vmatprep.subr.bf16.mxu0 0
      %546 = vmatpush1.bf16.msra.mxu0 0
      %547 = vmatprep.subr.bf16.mxu0 0
      %548 = vmatpush1.bf16.msra.mxu0 0
      %549 = vmatprep.subr.bf16.mxu0 0
      %550 = vmatpush1.bf16.msra.mxu0 0
      %551 = vmatprep.subr.bf16.mxu0 0
      %552 = vmatpush1.bf16.msra.mxu0 0
      %553 = vmatprep.subr.bf16.mxu0 0
      %554 = vmatpush1.bf16.msra.mxu0 0
      %555 = vmatprep.subr.bf16.mxu0 0
      %556 = vmatpush1.bf16.msra.mxu0 0
      %557 = vmatprep.subr.bf16.mxu0 0
      %558 = vmatpush1.bf16.msra.mxu0 0
      %559 = vmatprep.subr.bf16.mxu0 0
      %560 = vmatpush1.bf16.msra.mxu0 0
      %561 = vmatprep.subr.bf16.mxu0 0
      %562 = vmatpush1.bf16.msra.mxu0 0
      %563 = vmatprep.subr.bf16.mxu0 0
      %564 = vmatpush1.bf16.msra.mxu0 0
      %565 = vmatprep.subr.bf16.mxu0 0
      %566 = vmatpush1.bf16.msra.mxu0 0
      %567 = vmatprep.mubr.bf16.mxu0 0
      %568 = vmatmul.mubr.bf16.gmra.mrb[0].mxu0 %v483
      %v569 = vpop.f32.mrb[0].mxu0
      %v570 = vadd.f32 0.0, %v569
      %v571 = vpop.f32.mrb[0].mxu0
      %v572 = vpop.f32.mrb[0].mxu0
      %v573 = vpop.f32.mrb[0].mxu0
      %574 = vdwg.mxu0
      %v575 = vadd.f32 %v403, %v529
      %v576 = vadd.f32 %v405, %v531
      %v577 = vadd.f32 %v444, %v570
      %v578 = vld [vmem:[%s197] sm:$0xff]
      %s579 = scalar_lea.vmem %s1, 12
      %v580 = vld [vmem:[%s579] sm:$0xf]
      %v582 = vcombine.high %v578, %v578
      %v584 = vunpack.c.l.s4 1983009808
      %v585 = vunpack.c.0.s8 %v584
      %v586 = vlaneseq
      %v587 = vshrl.u32 %v586, 7
      %v588 = vsub.s32 %v585, %v587
      %v589 = vrot.slane %v578, %v588
      %v591 = vunpack.c.l.s4 1983009808
      %v592 = vunpack.c.0.s8 %v591
      %v593 = vlaneseq
      %v594 = vshrl.u32 %v593, 7
      %v595 = vsub.s32 %v592, %v594
      %v596 = vrot.slane %v582, %v595
      %v597 = vcombine.high %v589, %v589
      %v598 = vcombine.high %v596, %v596
      %599 = vrot.lane.b32.xlu0 %v589, 110
      %v600 = vpop.permute.xlu0 %599
      %601 = vrot.lane.b32.xlu0 %v597, 110
      %v602 = vpop.permute.xlu0 %601
      %603 = vrot.lane.b32.xlu0 %v596, 110
      %v604 = vpop.permute.xlu0 %603
      %605 = vrot.lane.b32.xlu0 %v598, 110
      %v606 = vpop.permute.xlu0 %605
      %vm607 = vcmask 900096
      %v608 = vsel %vm607, %v600, %v602
      %v609 = vsel %vm607, %v602, %v604
      %v610 = vsel %vm607, %v604, %v606
      %v612 = vsel %vm244, %v580, 0
      %v615 = vsel %vm248, %v608, 0
      %v618 = vsel %vm248, %v609, 0
      %v621 = vsel %vm248, %v610, 0
      %623 = vmatprep.subr.bf16.mxu0 %v618
      %624 = vmatpush1.bf16.msra.mxu0 %v615
      %625 = vmatprep.subr.bf16.mxu0 0
      %626 = vmatpush1.bf16.msra.mxu0 0
      %627 = vmatprep.subr.bf16.mxu0 0
      %628 = vmatpush1.bf16.msra.mxu0 0
      %629 = vmatprep.subr.bf16.mxu0 0
      %630 = vmatpush1.bf16.msra.mxu0 0
      %631 = vmatprep.subr.bf16.mxu0 0
      %632 = vmatpush1.bf16.msra.mxu0 0
      %633 = vmatprep.subr.bf16.mxu0 0
      %634 = vmatpush1.bf16.msra.mxu0 0
      %635 = vmatprep.subr.bf16.mxu0 0
      %636 = vmatpush1.bf16.msra.mxu0 0
      %637 = vmatprep.subr.bf16.mxu0 0
      %638 = vmatpush1.bf16.msra.mxu0 0
      %639 = vmatprep.subr.bf16.mxu0 0
      %640 = vmatpush1.bf16.msra.mxu0 0
      %641 = vmatprep.subr.bf16.mxu0 0
      %642 = vmatpush1.bf16.msra.mxu0 0
      %643 = vmatprep.subr.bf16.mxu0 0
      %644 = vmatpush1.bf16.msra.mxu0 0
      %645 = vmatprep.subr.bf16.mxu0 0
      %646 = vmatpush1.bf16.msra.mxu0 0
      %647 = vmatprep.subr.bf16.mxu0 0
      %648 = vmatpush1.bf16.msra.mxu0 0
      %649 = vmatprep.subr.bf16.mxu0 0
      %650 = vmatpush1.bf16.msra.mxu0 0
      %651 = vmatprep.subr.bf16.mxu0 0
      %652 = vmatpush1.bf16.msra.mxu0 0
      %653 = vmatprep.subr.bf16.mxu0 0
      %654 = vmatpush1.bf16.msra.mxu0 0
      %655 = vmatprep.mubr.bf16.mxu0 0
      %656 = vmatmul.mubr.bf16.gmra.mrb[0].mxu0 %v612
      %v657 = vpop.f32.mrb[0].mxu0
      %v658 = vadd.f32 0.0, %v657
      %v659 = vpop.f32.mrb[0].mxu0
      %v660 = vadd.f32 0.0, %v659
      %v661 = vpop.f32.mrb[0].mxu0
      %v662 = vpop.f32.mrb[0].mxu0
      %663 = vdwg.mxu0
      %664 = vmatprep.subr.bf16.mxu0 0
      %665 = vmatpush1.bf16.msra.mxu0 %v621
      %666 = vmatprep.subr.bf16.mxu0 0
      %667 = vmatpush1.bf16.msra.mxu0 0
      %668 = vmatprep.subr.bf16.mxu0 0
      %669 = vmatpush1.bf16.msra.mxu0 0
      %670 = vmatprep.subr.bf16.mxu0 0
      %671 = vmatpush1.bf16.msra.mxu0 0
      %672 = vmatprep.subr.bf16.mxu0 0
      %673 = vmatpush1.bf16.msra.mxu0 0
      %674 = vmatprep.subr.bf16.mxu0 0
      %675 = vmatpush1.bf16.msra.mxu0 0
      %676 = vmatprep.subr.bf16.mxu0 0
      %677 = vmatpush1.bf16.msra.mxu0 0
      %678 = vmatprep.subr.bf16.mxu0 0
      %679 = vmatpush1.bf16.msra.mxu0 0
      %680 = vmatprep.subr.bf16.mxu0 0
      %681 = vmatpush1.bf16.msra.mxu0 0
      %682 = vmatprep.subr.bf16.mxu0 0
      %683 = vmatpush1.bf16.msra.mxu0 0
      %684 = vmatprep.subr.bf16.mxu0 0
      %685 = vmatpush1.bf16.msra.mxu0 0
      %686 = vmatprep.subr.bf16.mxu0 0
      %687 = vmatpush1.bf16.msra.mxu0 0
      %688 = vmatprep.subr.bf16.mxu0 0
      %689 = vmatpush1.bf16.msra.mxu0 0
      %690 = vmatprep.subr.bf16.mxu0 0
      %691 = vmatpush1.bf16.msra.mxu0 0
      %692 = vmatprep.subr.bf16.mxu0 0
      %693 = vmatpush1.bf16.msra.mxu0 0
      %694 = vmatprep.subr.bf16.mxu0 0
      %695 = vmatpush1.bf16.msra.mxu0 0
      %696 = vmatprep.mubr.bf16.mxu0 0
      %697 = vmatmul.mubr.bf16.gmra.mrb[0].mxu0 %v612
      %v698 = vpop.f32.mrb[0].mxu0
      %v699 = vadd.f32 0.0, %v698
      %v700 = vpop.f32.mrb[0].mxu0
      %v701 = vpop.f32.mrb[0].mxu0
      %v702 = vpop.f32.mrb[0].mxu0
      %703 = vdwg.mxu0
      %v704 = vadd.f32 %v575, %v658
      %v705 = vadd.f32 %v576, %v660
      %v706 = vadd.f32 %v577, %v699
      %v707 = vld [vmem:[%s197] sm:$0xff]
      %s708 = scalar_lea.vmem %s1, 16
      %v709 = vld [vmem:[%s708] sm:$0xf]
      %v711 = vcombine.high %v707, %v707
      %v713 = vunpack.c.l.s4 1983009808
      %v714 = vunpack.c.0.s8 %v713
      %v715 = vlaneseq
      %v716 = vshrl.u32 %v715, 7
      %v717 = vsub.s32 %v714, %v716
      %v718 = vrot.slane %v707, %v717
      %v720 = vunpack.c.l.s4 1983009808
      %v721 = vunpack.c.0.s8 %v720
      %v722 = vlaneseq
      %v723 = vshrl.u32 %v722, 7
      %v724 = vsub.s32 %v721, %v723
      %v725 = vrot.slane %v711, %v724
      %v726 = vcombine.high %v718, %v718
      %v727 = vcombine.high %v725, %v725
      %728 = vrot.lane.b32.xlu0 %v718, 109
      %v729 = vpop.permute.xlu0 %728
      %730 = vrot.lane.b32.xlu0 %v726, 109
      %v731 = vpop.permute.xlu0 %730
      %732 = vrot.lane.b32.xlu0 %v725, 109
      %v733 = vpop.permute.xlu0 %732
      %734 = vrot.lane.b32.xlu0 %v727, 109
      %v735 = vpop.permute.xlu0 %734
      %vm736 = vcmask 891904
      %v737 = vsel %vm736, %v729, %v731
      %v738 = vsel %vm736, %v731, %v733
      %v739 = vsel %vm736, %v733, %v735
      %v741 = vsel %vm244, %v709, 0
      %v744 = vsel %vm248, %v737, 0
      %v747 = vsel %vm248, %v738, 0
      %v750 = vsel %vm248, %v739, 0
      %752 = vmatprep.subr.bf16.mxu0 %v747
      %753 = vmatpush1.bf16.msra.mxu0 %v744
      %754 = vmatprep.subr.bf16.mxu0 0
      %755 = vmatpush1.bf16.msra.mxu0 0
      %756 = vmatprep.subr.bf16.mxu0 0
      %757 = vmatpush1.bf16.msra.mxu0 0
      %758 = vmatprep.subr.bf16.mxu0 0
      %759 = vmatpush1.bf16.msra.mxu0 0
      %760 = vmatprep.subr.bf16.mxu0 0
      %761 = vmatpush1.bf16.msra.mxu0 0
      %762 = vmatprep.subr.bf16.mxu0 0
      %763 = vmatpush1.bf16.msra.mxu0 0
      %764 = vmatprep.subr.bf16.mxu0 0
      %765 = vmatpush1.bf16.msra.mxu0 0
      %766 = vmatprep.subr.bf16.mxu0 0
      %767 = vmatpush1.bf16.msra.mxu0 0
      %768 = vmatprep.subr.bf16.mxu0 0
      %769 = vmatpush1.bf16.msra.mxu0 0
      %770 = vmatprep.subr.bf16.mxu0 0
      %771 = vmatpush1.bf16.msra.mxu0 0
      %772 = vmatprep.subr.bf16.mxu0 0
      %773 = vmatpush1.bf16.msra.mxu0 0
      %774 = vmatprep.subr.bf16.mxu0 0
      %775 = vmatpush1.bf16.msra.mxu0 0
      %776 = vmatprep.subr.bf16.mxu0 0
      %777 = vmatpush1.bf16.msra.mxu0 0
      %778 = vmatprep.subr.bf16.mxu0 0
      %779 = vmatpush1.bf16.msra.mxu0 0
      %780 = vmatprep.subr.bf16.mxu0 0
      %781 = vmatpush1.bf16.msra.mxu0 0
      %782 = vmatprep.subr.bf16.mxu0 0
      %783 = vmatpush1.bf16.msra.mxu0 0
      %784 = vmatprep.mubr.bf16.mxu0 0
      %785 = vmatmul.mubr.bf16.gmra.mrb[0].mxu0 %v741
      %v786 = vpop.f32.mrb[0].mxu0
      %v787 = vadd.f32 0.0, %v786
      %v788 = vpop.f32.mrb[0].mxu0
      %v789 = vadd.f32 0.0, %v788
      %v790 = vpop.f32.mrb[0].mxu0
      %v791 = vpop.f32.mrb[0].mxu0
      %792 = vdwg.mxu0
      %793 = vmatprep.subr.bf16.mxu0 0
      %794 = vmatpush1.bf16.msra.mxu0 %v750
      %795 = vmatprep.subr.bf16.mxu0 0
      %796 = vmatpush1.bf16.msra.mxu0 0
      %797 = vmatprep.subr.bf16.mxu0 0
      %798 = vmatpush1.bf16.msra.mxu0 0
      %799 = vmatprep.subr.bf16.mxu0 0
      %800 = vmatpush1.bf16.msra.mxu0 0
      %801 = vmatprep.subr.bf16.mxu0 0
      %802 = vmatpush1.bf16.msra.mxu0 0
      %803 = vmatprep.subr.bf16.mxu0 0
      %804 = vmatpush1.bf16.msra.mxu0 0
      %805 = vmatprep.subr.bf16.mxu0 0
      %806 = vmatpush1.bf16.msra.mxu0 0
      %807 = vmatprep.subr.bf16.mxu0 0
      %808 = vmatpush1.bf16.msra.mxu0 0
      %809 = vmatprep.subr.bf16.mxu0 0
      %810 = vmatpush1.bf16.msra.mxu0 0
      %811 = vmatprep.subr.bf16.mxu0 0
      %812 = vmatpush1.bf16.msra.mxu0 0
      %813 = vmatprep.subr.bf16.mxu0 0
      %814 = vmatpush1.bf16.msra.mxu0 0
      %815 = vmatprep.subr.bf16.mxu0 0
      %816 = vmatpush1.bf16.msra.mxu0 0
      %817 = vmatprep.subr.bf16.mxu0 0
      %818 = vmatpush1.bf16.msra.mxu0 0
      %819 = vmatprep.subr.bf16.mxu0 0
      %820 = vmatpush1.bf16.msra.mxu0 0
      %821 = vmatprep.subr.bf16.mxu0 0
      %822 = vmatpush1.bf16.msra.mxu0 0
      %823 = vmatprep.subr.bf16.mxu0 0
      %824 = vmatpush1.bf16.msra.mxu0 0
      %825 = vmatprep.mubr.bf16.mxu0 0
      %826 = vmatmul.mubr.bf16.gmra.mrb[0].mxu0 %v741
      %v827 = vpop.f32.mrb[0].mxu0
      %v828 = vadd.f32 0.0, %v827
      %v829 = vpop.f32.mrb[0].mxu0
      %v830 = vpop.f32.mrb[0].mxu0
      %v831 = vpop.f32.mrb[0].mxu0
      %832 = vdwg.mxu0
      %v833 = vadd.f32 %v704, %v787
      %v834 = vadd.f32 %v705, %v789
      %v835 = vadd.f32 %v706, %v828
      %v836 = vld [vmem:[%s197] sm:$0xff]
      %s837 = scalar_lea.vmem %s1, 20
      %v838 = vld [vmem:[%s837] sm:$0xf]
      %v840 = vcombine.high %v836, %v836
      %v842 = vunpack.c.l.s4 1983009808
      %v843 = vunpack.c.0.s8 %v842
      %v844 = vlaneseq
      %v845 = vshrl.u32 %v844, 7
      %v846 = vsub.s32 %v843, %v845
      %v847 = vrot.slane %v836, %v846
      %v849 = vunpack.c.l.s4 1983009808
      %v850 = vunpack.c.0.s8 %v849
      %v851 = vlaneseq
      %v852 = vshrl.u32 %v851, 7
      %v853 = vsub.s32 %v850, %v852
      %v854 = vrot.slane %v840, %v853
      %v855 = vcombine.high %v847, %v847
      %v856 = vcombine.high %v854, %v854
      %857 = vrot.lane.b32.xlu0 %v847, 108
      %v858 = vpop.permute.xlu0 %857
      %859 = vrot.lane.b32.xlu0 %v855, 108
      %v860 = vpop.permute.xlu0 %859
      %861 = vrot.lane.b32.xlu0 %v854, 108
      %v862 = vpop.permute.xlu0 %861
      %863 = vrot.lane.b32.xlu0 %v856, 108
      %v864 = vpop.permute.xlu0 %863
      %vm865 = vcmask 883712
      %v866 = vsel %vm865, %v858, %v860
      %v867 = vsel %vm865, %v860, %v862
      %v868 = vsel %vm865, %v862, %v864
      %v870 = vsel %vm244, %v838, 0
      %v873 = vsel %vm248, %v866, 0
      %v876 = vsel %vm248, %v867, 0
      %v879 = vsel %vm248, %v868, 0
      %881 = vmatprep.subr.bf16.mxu0 %v876
      %882 = vmatpush1.bf16.msra.mxu0 %v873
      %883 = vmatprep.subr.bf16.mxu0 0
      %884 = vmatpush1.bf16.msra.mxu0 0
      %885 = vmatprep.subr.bf16.mxu0 0
      %886 = vmatpush1.bf16.msra.mxu0 0
      %887 = vmatprep.subr.bf16.mxu0 0
      %888 = vmatpush1.bf16.msra.mxu0 0
      %889 = vmatprep.subr.bf16.mxu0 0
      %890 = vmatpush1.bf16.msra.mxu0 0
      %891 = vmatprep.subr.bf16.mxu0 0
      %892 = vmatpush1.bf16.msra.mxu0 0
      %893 = vmatprep.subr.bf16.mxu0 0
      %894 = vmatpush1.bf16.msra.mxu0 0
      %895 = vmatprep.subr.bf16.mxu0 0
      %896 = vmatpush1.bf16.msra.mxu0 0
      %897 = vmatprep.subr.bf16.mxu0 0
      %898 = vmatpush1.bf16.msra.mxu0 0
      %899 = vmatprep.subr.bf16.mxu0 0
      %900 = vmatpush1.bf16.msra.mxu0 0
      %901 = vmatprep.subr.bf16.mxu0 0
      %902 = vmatpush1.bf16.msra.mxu0 0
      %903 = vmatprep.subr.bf16.mxu0 0
      %904 = vmatpush1.bf16.msra.mxu0 0
      %905 = vmatprep.subr.bf16.mxu0 0
      %906 = vmatpush1.bf16.msra.mxu0 0
      %907 = vmatprep.subr.bf16.mxu0 0
      %908 = vmatpush1.bf16.msra.mxu0 0
      %909 = vmatprep.subr.bf16.mxu0 0
      %910 = vmatpush1.bf16.msra.mxu0 0
      %911 = vmatprep.subr.bf16.mxu0 0
      %912 = vmatpush1.bf16.msra.mxu0 0
      %913 = vmatprep.mubr.bf16.mxu0 0
      %914 = vmatmul.mubr.bf16.gmra.mrb[0].mxu0 %v870
      %v915 = vpop.f32.mrb[0].mxu0
      %v916 = vadd.f32 0.0, %v915
      %v917 = vpop.f32.mrb[0].mxu0
      %v918 = vadd.f32 0.0, %v917
      %v919 = vpop.f32.mrb[0].mxu0
      %v920 = vpop.f32.mrb[0].mxu0
      %921 = vdwg.mxu0
      %922 = vmatprep.subr.bf16.mxu0 0
      %923 = vmatpush1.bf16.msra.mxu0 %v879
      %924 = vmatprep.subr.bf16.mxu0 0
      %925 = vmatpush1.bf16.msra.mxu0 0
      %926 = vmatprep.subr.bf16.mxu0 0
      %927 = vmatpush1.bf16.msra.mxu0 0
      %928 = vmatprep.subr.bf16.mxu0 0
      %929 = vmatpush1.bf16.msra.mxu0 0
      %930 = vmatprep.subr.bf16.mxu0 0
      %931 = vmatpush1.bf16.msra.mxu0 0
      %932 = vmatprep.subr.bf16.mxu0 0
      %933 = vmatpush1.bf16.msra.mxu0 0
      %934 = vmatprep.subr.bf16.mxu0 0
      %935 = vmatpush1.bf16.msra.mxu0 0
      %936 = vmatprep.subr.bf16.mxu0 0
      %937 = vmatpush1.bf16.msra.mxu0 0
      %938 = vmatprep.subr.bf16.mxu0 0
      %939 = vmatpush1.bf16.msra.mxu0 0
      %940 = vmatprep.subr.bf16.mxu0 0
      %941 = vmatpush1.bf16.msra.mxu0 0
      %942 = vmatprep.subr.bf16.mxu0 0
      %943 = vmatpush1.bf16.msra.mxu0 0
      %944 = vmatprep.subr.bf16.mxu0 0
      %945 = vmatpush1.bf16.msra.mxu0 0
      %946 = vmatprep.subr.bf16.mxu0 0
      %947 = vmatpush1.bf16.msra.mxu0 0
      %948 = vmatprep.subr.bf16.mxu0 0
      %949 = vmatpush1.bf16.msra.mxu0 0
      %950 = vmatprep.subr.bf16.mxu0 0
      %951 = vmatpush1.bf16.msra.mxu0 0
      %952 = vmatprep.subr.bf16.mxu0 0
      %953 = vmatpush1.bf16.msra.mxu0 0
      %954 = vmatprep.mubr.bf16.mxu0 0
      %955 = vmatmul.mubr.bf16.gmra.mrb[0].mxu0 %v870
      %v956 = vpop.f32.mrb[0].mxu0
      %v957 = vadd.f32 0.0, %v956
      %v958 = vpop.f32.mrb[0].mxu0
      %v959 = vpop.f32.mrb[0].mxu0
      %v960 = vpop.f32.mrb[0].mxu0
      %961 = vdwg.mxu0
      %v962 = vadd.f32 %v833, %v916
      %v963 = vadd.f32 %v834, %v918
      %v964 = vadd.f32 %v835, %v957
      %v965 = vld [vmem:[%s197] sm:$0xff]
      %s966 = scalar_lea.vmem %s1, 24
      %v967 = vld [vmem:[%s966] sm:$0xf]
      %v969 = vcombine.high %v965, %v965
      %v971 = vunpack.c.l.s4 1983009808
      %v972 = vunpack.c.0.s8 %v971
      %v973 = vlaneseq
      %v974 = vshrl.u32 %v973, 7
      %v975 = vsub.s32 %v972, %v974
      %v976 = vrot.slane %v965, %v975
      %v978 = vunpack.c.l.s4 1983009808
      %v979 = vunpack.c.0.s8 %v978
      %v980 = vlaneseq
      %v981 = vshrl.u32 %v980, 7
      %v982 = vsub.s32 %v979, %v981
      %v983 = vrot.slane %v969, %v982
      %v984 = vcombine.high %v976, %v976
      %v985 = vcombine.high %v983, %v983
      %986 = vrot.lane.b32.xlu0 %v976, 92
      %v987 = vpop.permute.xlu0 %986
      %988 = vrot.lane.b32.xlu0 %v984, 92
      %v989 = vpop.permute.xlu0 %988
      %990 = vrot.lane.b32.xlu0 %v983, 92
      %v991 = vpop.permute.xlu0 %990
      %992 = vrot.lane.b32.xlu0 %v985, 92
      %v993 = vpop.permute.xlu0 %992
      %vm994 = vcmask 752640
      %v995 = vsel %vm994, %v987, %v989
      %v996 = vsel %vm994, %v989, %v991
      %v997 = vsel %vm994, %v991, %v993
      %v999 = vsel %vm244, %v967, 0
      %v1002 = vsel %vm248, %v995, 0
      %v1005 = vsel %vm248, %v996, 0
      %v1008 = vsel %vm248, %v997, 0
      %1010 = vmatprep.subr.bf16.mxu0 %v1005
      %1011 = vmatpush1.bf16.msra.mxu0 %v1002
      %1012 = vmatprep.subr.bf16.mxu0 0
      %1013 = vmatpush1.bf16.msra.mxu0 0
      %1014 = vmatprep.subr.bf16.mxu0 0
      %1015 = vmatpush1.bf16.msra.mxu0 0
      %1016 = vmatprep.subr.bf16.mxu0 0
      %1017 = vmatpush1.bf16.msra.mxu0 0
      %1018 = vmatprep.subr.bf16.mxu0 0
      %1019 = vmatpush1.bf16.msra.mxu0 0
      %1020 = vmatprep.subr.bf16.mxu0 0
      %1021 = vmatpush1.bf16.msra.mxu0 0
      %1022 = vmatprep.subr.bf16.mxu0 0
      %1023 = vmatpush1.bf16.msra.mxu0 0
      %1024 = vmatprep.subr.bf16.mxu0 0
      %1025 = vmatpush1.bf16.msra.mxu0 0
      %1026 = vmatprep.subr.bf16.mxu0 0
      %1027 = vmatpush1.bf16.msra.mxu0 0
      %1028 = vmatprep.subr.bf16.mxu0 0
      %1029 = vmatpush1.bf16.msra.mxu0 0
      %1030 = vmatprep.subr.bf16.mxu0 0
      %1031 = vmatpush1.bf16.msra.mxu0 0
      %1032 = vmatprep.subr.bf16.mxu0 0
      %1033 = vmatpush1.bf16.msra.mxu0 0
      %1034 = vmatprep.subr.bf16.mxu0 0
      %1035 = vmatpush1.bf16.msra.mxu0 0
      %1036 = vmatprep.subr.bf16.mxu0 0
      %1037 = vmatpush1.bf16.msra.mxu0 0
      %1038 = vmatprep.subr.bf16.mxu0 0
      %1039 = vmatpush1.bf16.msra.mxu0 0
      %1040 = vmatprep.subr.bf16.mxu0 0
      %1041 = vmatpush1.bf16.msra.mxu0 0
      %1042 = vmatprep.mubr.bf16.mxu0 0
      %1043 = vmatmul.mubr.bf16.gmra.mrb[0].mxu0 %v999
      %v1044 = vpop.f32.mrb[0].mxu0
      %v1045 = vadd.f32 0.0, %v1044
      %v1046 = vpop.f32.mrb[0].mxu0
      %v1047 = vadd.f32 0.0, %v1046
      %v1048 = vpop.f32.mrb[0].mxu0
      %v1049 = vpop.f32.mrb[0].mxu0
      %1050 = vdwg.mxu0
      %1051 = vmatprep.subr.bf16.mxu0 0
      %1052 = vmatpush1.bf16.msra.mxu0 %v1008
      %1053 = vmatprep.subr.bf16.mxu0 0
      %1054 = vmatpush1.bf16.msra.mxu0 0
      %1055 = vmatprep.subr.bf16.mxu0 0
      %1056 = vmatpush1.bf16.msra.mxu0 0
      %1057 = vmatprep.subr.bf16.mxu0 0
      %1058 = vmatpush1.bf16.msra.mxu0 0
      %1059 = vmatprep.subr.bf16.mxu0 0
      %1060 = vmatpush1.bf16.msra.mxu0 0
      %1061 = vmatprep.subr.bf16.mxu0 0
      %1062 = vmatpush1.bf16.msra.mxu0 0
      %1063 = vmatprep.subr.bf16.mxu0 0
      %1064 = vmatpush1.bf16.msra.mxu0 0
      %1065 = vmatprep.subr.bf16.mxu0 0
      %1066 = vmatpush1.bf16.msra.mxu0 0
      %1067 = vmatprep.subr.bf16.mxu0 0
      %1068 = vmatpush1.bf16.msra.mxu0 0
      %1069 = vmatprep.subr.bf16.mxu0 0
      %1070 = vmatpush1.bf16.msra.mxu0 0
      %1071 = vmatprep.subr.bf16.mxu0 0
      %1072 = vmatpush1.bf16.msra.mxu0 0
      %1073 = vmatprep.subr.bf16.mxu0 0
      %1074 = vmatpush1.bf16.msra.mxu0 0
      %1075 = vmatprep.subr.bf16.mxu0 0
      %1076 = vmatpush1.bf16.msra.mxu0 0
      %1077 = vmatprep.subr.bf16.mxu0 0
      %1078 = vmatpush1.bf16.msra.mxu0 0
      %1079 = vmatprep.subr.bf16.mxu0 0
      %1080 = vmatpush1.bf16.msra.mxu0 0
      %1081 = vmatprep.subr.bf16.mxu0 0
      %1082 = vmatpush1.bf16.msra.mxu0 0
      %1083 = vmatprep.mubr.bf16.mxu0 0
      %1084 = vmatmul.mubr.bf16.gmra.mrb[0].mxu0 %v999
      %v1085 = vpop.f32.mrb[0].mxu0
      %v1086 = vadd.f32 0.0, %v1085
      %v1087 = vpop.f32.mrb[0].mxu0
      %v1088 = vpop.f32.mrb[0].mxu0
      %v1089 = vpop.f32.mrb[0].mxu0
      %1090 = vdwg.mxu0
      %v1091 = vadd.f32 %v962, %v1045
      %v1092 = vadd.f32 %v963, %v1047
      %v1093 = vadd.f32 %v964, %v1086
      %v1094 = vld [vmem:[%s197] sm:$0xff]
      %s1095 = scalar_lea.vmem %s1, 28
      %v1096 = vld [vmem:[%s1095] sm:$0xf]
      %v1098 = vcombine.high %v1094, %v1094
      %v1100 = vunpack.c.l.s4 1983009808
      %v1101 = vunpack.c.0.s8 %v1100
      %v1102 = vlaneseq
      %v1103 = vshrl.u32 %v1102, 7
      %v1104 = vsub.s32 %v1101, %v1103
      %v1105 = vrot.slane %v1094, %v1104
      %v1107 = vunpack.c.l.s4 1983009808
      %v1108 = vunpack.c.0.s8 %v1107
      %v1109 = vlaneseq
      %v1110 = vshrl.u32 %v1109, 7
      %v1111 = vsub.s32 %v1108, %v1110
      %v1112 = vrot.slane %v1098, %v1111
      %v1113 = vcombine.high %v1105, %v1105
      %v1114 = vcombine.high %v1112, %v1112
      %1115 = vrot.lane.b32.xlu0 %v1105, 91
      %v1116 = vpop.permute.xlu0 %1115
      %1117 = vrot.lane.b32.xlu0 %v1113, 91
      %v1118 = vpop.permute.xlu0 %1117
      %1119 = vrot.lane.b32.xlu0 %v1112, 91
      %v1120 = vpop.permute.xlu0 %1119
      %1121 = vrot.lane.b32.xlu0 %v1114, 91
      %v1122 = vpop.permute.xlu0 %1121
      %vm1123 = vcmask 744448
      %v1124 = vsel %vm1123, %v1116, %v1118
      %v1125 = vsel %vm1123, %v1118, %v1120
      %v1126 = vsel %vm1123, %v1120, %v1122
      %v1128 = vsel %vm244, %v1096, 0
      %v1131 = vsel %vm248, %v1124, 0
      %v1134 = vsel %vm248, %v1125, 0
      %v1137 = vsel %vm248, %v1126, 0
      %1139 = vmatprep.subr.bf16.mxu0 %v1134
      %1140 = vmatpush1.bf16.msra.mxu0 %v1131
      %1141 = vmatprep.subr.bf16.mxu0 0
      %1142 = vmatpush1.bf16.msra.mxu0 0
      %1143 = vmatprep.subr.bf16.mxu0 0
      %1144 = vmatpush1.bf16.msra.mxu0 0
      %1145 = vmatprep.subr.bf16.mxu0 0
      %1146 = vmatpush1.bf16.msra.mxu0 0
      %1147 = vmatprep.subr.bf16.mxu0 0
      %1148 = vmatpush1.bf16.msra.mxu0 0
      %1149 = vmatprep.subr.bf16.mxu0 0
      %1150 = vmatpush1.bf16.msra.mxu0 0
      %1151 = vmatprep.subr.bf16.mxu0 0
      %1152 = vmatpush1.bf16.msra.mxu0 0
      %1153 = vmatprep.subr.bf16.mxu0 0
      %1154 = vmatpush1.bf16.msra.mxu0 0
      %1155 = vmatprep.subr.bf16.mxu0 0
      %1156 = vmatpush1.bf16.msra.mxu0 0
      %1157 = vmatprep.subr.bf16.mxu0 0
      %1158 = vmatpush1.bf16.msra.mxu0 0
      %1159 = vmatprep.subr.bf16.mxu0 0
      %1160 = vmatpush1.bf16.msra.mxu0 0
      %1161 = vmatprep.subr.bf16.mxu0 0
      %1162 = vmatpush1.bf16.msra.mxu0 0
      %1163 = vmatprep.subr.bf16.mxu0 0
      %1164 = vmatpush1.bf16.msra.mxu0 0
      %1165 = vmatprep.subr.bf16.mxu0 0
      %1166 = vmatpush1.bf16.msra.mxu0 0
      %1167 = vmatprep.subr.bf16.mxu0 0
      %1168 = vmatpush1.bf16.msra.mxu0 0
      %1169 = vmatprep.subr.bf16.mxu0 0
      %1170 = vmatpush1.bf16.msra.mxu0 0
      %1171 = vmatprep.mubr.bf16.mxu0 0
      %1172 = vmatmul.mubr.bf16.gmra.mrb[0].mxu0 %v1128
      %v1173 = vpop.f32.mrb[0].mxu0
      %v1174 = vadd.f32 0.0, %v1173
      %v1175 = vpop.f32.mrb[0].mxu0
      %v1176 = vadd.f32 0.0, %v1175
      %v1177 = vpop.f32.mrb[0].mxu0
      %v1178 = vpop.f32.mrb[0].mxu0
      %1179 = vdwg.mxu0
      %1180 = vmatprep.subr.bf16.mxu0 0
      %1181 = vmatpush1.bf16.msra.mxu0 %v1137
      %1182 = vmatprep.subr.bf16.mxu0 0
      %1183 = vmatpush1.bf16.msra.mxu0 0
      %1184 = vmatprep.subr.bf16.mxu0 0
      %1185 = vmatpush1.bf16.msra.mxu0 0
      %1186 = vmatprep.subr.bf16.mxu0 0
      %1187 = vmatpush1.bf16.msra.mxu0 0
      %1188 = vmatprep.subr.bf16.mxu0 0
      %1189 = vmatpush1.bf16.msra.mxu0 0
      %1190 = vmatprep.subr.bf16.mxu0 0
      %1191 = vmatpush1.bf16.msra.mxu0 0
      %1192 = vmatprep.subr.bf16.mxu0 0
      %1193 = vmatpush1.bf16.msra.mxu0 0
      %1194 = vmatprep.subr.bf16.mxu0 0
      %1195 = vmatpush1.bf16.msra.mxu0 0
      %1196 = vmatprep.subr.bf16.mxu0 0
      %1197 = vmatpush1.bf16.msra.mxu0 0
      %1198 = vmatprep.subr.bf16.mxu0 0
      %1199 = vmatpush1.bf16.msra.mxu0 0
      %1200 = vmatprep.subr.bf16.mxu0 0
      %1201 = vmatpush1.bf16.msra.mxu0 0
      %1202 = vmatprep.subr.bf16.mxu0 0
      %1203 = vmatpush1.bf16.msra.mxu0 0
      %1204 = vmatprep.subr.bf16.mxu0 0
      %1205 = vmatpush1.bf16.msra.mxu0 0
      %1206 = vmatprep.subr.bf16.mxu0 0
      %1207 = vmatpush1.bf16.msra.mxu0 0
      %1208 = vmatprep.subr.bf16.mxu0 0
      %1209 = vmatpush1.bf16.msra.mxu0 0
      %1210 = vmatprep.subr.bf16.mxu0 0
      %1211 = vmatpush1.bf16.msra.mxu0 0
      %1212 = vmatprep.mubr.bf16.mxu0 0
      %1213 = vmatmul.mubr.bf16.gmra.mrb[0].mxu0 %v1128
      %v1214 = vpop.f32.mrb[0].mxu0
      %v1215 = vadd.f32 0.0, %v1214
      %v1216 = vpop.f32.mrb[0].mxu0
      %v1217 = vpop.f32.mrb[0].mxu0
      %v1218 = vpop.f32.mrb[0].mxu0
      %1219 = vdwg.mxu0
      %v1220 = vadd.f32 %v1091, %v1174
      %v1221 = vadd.f32 %v1092, %v1176
      %v1222 = vadd.f32 %v1093, %v1215
      %v1223 = vld [vmem:[%s197] sm:$0xff]
      %s1224 = scalar_lea.vmem %s1, 32
      %v1225 = vld [vmem:[%s1224] sm:$0xf]
      %v1227 = vcombine.high %v1223, %v1223
      %v1229 = vunpack.c.l.s4 1983009808
      %v1230 = vunpack.c.0.s8 %v1229
      %v1231 = vlaneseq
      %v1232 = vshrl.u32 %v1231, 7
      %v1233 = vsub.s32 %v1230, %v1232
      %v1234 = vrot.slane %v1223, %v1233
      %v1236 = vunpack.c.l.s4 1983009808
      %v1237 = vunpack.c.0.s8 %v1236
      %v1238 = vlaneseq
      %v1239 = vshrl.u32 %v1238, 7
      %v1240 = vsub.s32 %v1237, %v1239
      %v1241 = vrot.slane %v1227, %v1240
      %v1242 = vcombine.high %v1234, %v1234
      %v1243 = vcombine.high %v1241, %v1241
      %1244 = vrot.lane.b32.xlu0 %v1234, 90
      %v1245 = vpop.permute.xlu0 %1244
      %1246 = vrot.lane.b32.xlu0 %v1242, 90
      %v1247 = vpop.permute.xlu0 %1246
      %1248 = vrot.lane.b32.xlu0 %v1241, 90
      %v1249 = vpop.permute.xlu0 %1248
      %1250 = vrot.lane.b32.xlu0 %v1243, 90
      %v1251 = vpop.permute.xlu0 %1250
      %vm1252 = vcmask 736256
      %v1253 = vsel %vm1252, %v1245, %v1247
      %v1254 = vsel %vm1252, %v1247, %v1249
      %v1255 = vsel %vm1252, %v1249, %v1251
      %v1257 = vsel %vm244, %v1225, 0
      %v1260 = vsel %vm248, %v1253, 0
      %v1263 = vsel %vm248, %v1254, 0
      %v1266 = vsel %vm248, %v1255, 0
      %1268 = vmatprep.subr.bf16.mxu0 %v1263
      %1269 = vmatpush1.bf16.msra.mxu0 %v1260
      %1270 = vmatprep.subr.bf16.mxu0 0
      %1271 = vmatpush1.bf16.msra.mxu0 0
      %1272 = vmatprep.subr.bf16.mxu0 0
      %1273 = vmatpush1.bf16.msra.mxu0 0
      %1274 = vmatprep.subr.bf16.mxu0 0
      %1275 = vmatpush1.bf16.msra.mxu0 0
      %1276 = vmatprep.subr.bf16.mxu0 0
      %1277 = vmatpush1.bf16.msra.mxu0 0
      %1278 = vmatprep.subr.bf16.mxu0 0
      %1279 = vmatpush1.bf16.msra.mxu0 0
      %1280 = vmatprep.subr.bf16.mxu0 0
      %1281 = vmatpush1.bf16.msra.mxu0 0
      %1282 = vmatprep.subr.bf16.mxu0 0
      %1283 = vmatpush1.bf16.msra.mxu0 0
      %1284 = vmatprep.subr.bf16.mxu0 0
      %1285 = vmatpush1.bf16.msra.mxu0 0
      %1286 = vmatprep.subr.bf16.mxu0 0
      %1287 = vmatpush1.bf16.msra.mxu0 0
      %1288 = vmatprep.subr.bf16.mxu0 0
      %1289 = vmatpush1.bf16.msra.mxu0 0
      %1290 = vmatprep.subr.bf16.mxu0 0
      %1291 = vmatpush1.bf16.msra.mxu0 0
      %1292 = vmatprep.subr.bf16.mxu0 0
      %1293 = vmatpush1.bf16.msra.mxu0 0
      %1294 = vmatprep.subr.bf16.mxu0 0
      %1295 = vmatpush1.bf16.msra.mxu0 0
      %1296 = vmatprep.subr.bf16.mxu0 0
      %1297 = vmatpush1.bf16.msra.mxu0 0
      %1298 = vmatprep.subr.bf16.mxu0 0
      %1299 = vmatpush1.bf16.msra.mxu0 0
      %1300 = vmatprep.mubr.bf16.mxu0 0
      %1301 = vmatmul.mubr.bf16.gmra.mrb[0].mxu0 %v1257
      %v1302 = vpop.f32.mrb[0].mxu0
      %v1303 = vadd.f32 0.0, %v1302
      %v1304 = vpop.f32.mrb[0].mxu0
      %v1305 = vadd.f32 0.0, %v1304
      %v1306 = vpop.f32.mrb[0].mxu0
      %v1307 = vpop.f32.mrb[0].mxu0
      %1308 = vdwg.mxu0
      %1309 = vmatprep.subr.bf16.mxu0 0
      %1310 = vmatpush1.bf16.msra.mxu0 %v1266
      %1311 = vmatprep.subr.bf16.mxu0 0
      %1312 = vmatpush1.bf16.msra.mxu0 0
      %1313 = vmatprep.subr.bf16.mxu0 0
      %1314 = vmatpush1.bf16.msra.mxu0 0
      %1315 = vmatprep.subr.bf16.mxu0 0
      %1316 = vmatpush1.bf16.msra.mxu0 0
      %1317 = vmatprep.subr.bf16.mxu0 0
      %1318 = vmatpush1.bf16.msra.mxu0 0
      %1319 = vmatprep.subr.bf16.mxu0 0
      %1320 = vmatpush1.bf16.msra.mxu0 0
      %1321 = vmatprep.subr.bf16.mxu0 0
      %1322 = vmatpush1.bf16.msra.mxu0 0
      %1323 = vmatprep.subr.bf16.mxu0 0
      %1324 = vmatpush1.bf16.msra.mxu0 0
      %1325 = vmatprep.subr.bf16.mxu0 0
      %1326 = vmatpush1.bf16.msra.mxu0 0
      %1327 = vmatprep.subr.bf16.mxu0 0
      %1328 = vmatpush1.bf16.msra.mxu0 0
      %1329 = vmatprep.subr.bf16.mxu0 0
      %1330 = vmatpush1.bf16.msra.mxu0 0
      %1331 = vmatprep.subr.bf16.mxu0 0
      %1332 = vmatpush1.bf16.msra.mxu0 0
      %1333 = vmatprep.subr.bf16.mxu0 0
      %1334 = vmatpush1.bf16.msra.mxu0 0
      %1335 = vmatprep.subr.bf16.mxu0 0
      %1336 = vmatpush1.bf16.msra.mxu0 0
      %1337 = vmatprep.subr.bf16.mxu0 0
      %1338 = vmatpush1.bf16.msra.mxu0 0
      %1339 = vmatprep.subr.bf16.mxu0 0
      %1340 = vmatpush1.bf16.msra.mxu0 0
      %1341 = vmatprep.mubr.bf16.mxu0 0
      %1342 = vmatmul.mubr.bf16.gmra.mrb[0].mxu0 %v1257
      %v1343 = vpop.f32.mrb[0].mxu0
      %v1344 = vadd.f32 0.0, %v1343
      %v1345 = vpop.f32.mrb[0].mxu0
      %v1346 = vpop.f32.mrb[0].mxu0
      %v1347 = vpop.f32.mrb[0].mxu0
      %1348 = vdwg.mxu0
      %v1349 = vadd.f32 %v1220, %v1303
      %v1350 = vadd.f32 %v1221, %v1305
      %v1351 = vadd.f32 %v1222, %v1344
      %v1352 = vld [vmem:[%s2] sm:$0xff]
      %1354 = vset.pattern.permute.xlu0 0
      %1355 = vperm.xlu0 %1354, %v1352
      %v1356 = vpop.permute.xlu0 %1355
      %v1358 = vadd.f32 %v1349, %v1356
      %v1359 = vadd.f32 %v1350, %v1356
      %v1360 = vadd.f32 %v1351, %v1356
      %v1361 = vmax.f32 %v1358, 0.0
      %v1362 = vmax.f32 %v1359, 0.0
      %v1363 = vmax.f32 %v1360, 0.0
      %1364 = vst [vmem:[%s206] sm:$0xff] %v1361
      %1365 = vst [vmem:[%s206 + $0x8] sm:$0xff] %v1362
      %1366 = vst [vmem:[%s206 + $0x10] sm:$0xff] %v1363
      %s1367 = smul.u32 3, %s19
      %p1368 = scmp.lt.s32.totalorder %s18, 1
      %s1369 = scalar_select %p1368, %s18, 1
      %p1370 = scmp.lt.s32.totalorder %s1367, 2
      %s1371 = scalar_select %p1370, %s1367, 2
      %s1372 = smul.addr %s1369, 3
      %s1373 = sadd.s32 %s1371, %s1372
      %s1374 = smul.addr %s1373, 8
      %s1375 = scalar_lea.vmem %s3, %s1374
      // Predicated region
      $region33: #{basic_conv2d.1} parent=31 // pred_check
        %p1376 = pneg %p116
      $region34: #{basic_conv2d.1} parent=31 // pred_check_branch
        %1378 = sbr.rel (%p1376) target = $region36
      $region35: #{basic_conv2d.1} parent=31 // pred_region
        %s1379 = smul.u32 3, %s19
      $region36: #{basic_conv2d.1} parent=31 // pred_fallthru
        _
    $region32: #{basic_conv2d.1} parent=5 // pred_fallthru
      _
    %p1380 = scmp.le.s32.totalorder 2, %s9
    // Predicated region
    $region37: #{basic_conv2d.1} parent=5 // pred_check
      %p1381 = pneg %p1380
    $region38: #{basic_conv2d.1} parent=5 // pred_check_branch
      %1383 = sbr.rel (%p1381) target = $region40
    $region39: #{basic_conv2d.1} parent=5 // pred_region
      %s1384 = ssub.s32 %s9, 2
      // Predicated region
      $region41: #{basic_conv2d.1} parent=39 // pred_check
        %p1385 = pneg %p122
      $region42: #{basic_conv2d.1} parent=39 // pred_check_branch
        %1387 = sbr.rel (%p1385) target = $region44
      $region43: #{basic_conv2d.1} parent=39 // pred_region
        %s1388 = smul.u32 3, %s21
        %p1389 = scmp.lt.s32.totalorder %s20, 1
        %s1390 = scalar_select %p1389, %s20, 1
        %p1391 = scmp.lt.s32.totalorder %s1388, 2
        %s1392 = scalar_select %p1391, %s1388, 2
        %s1393 = smul.addr %s1390, 3
        %s1394 = sadd.s32 %s1392, %s1393
        %s1395 = smul.addr %s1394, 8
        %s1396 = scalar_lea.vmem %s3, %s1395
      $region44: #{basic_conv2d.1} parent=39 // pred_fallthru
        _
    $region40: #{basic_conv2d.1} parent=5 // pred_fallthru
      _
  $region6: #{basic_conv2d.1} parent=0 // loop_footer
    %s13 = sadd.s32 1, %s9
  $region7: #{basic_conv2d.1} parent=0 // loop_footer_branch
    %8 = sbr.rel target = $region3
  $region8: #{basic_conv2d.1} parent=0 // loop_exit
    _

</llo_original>
